<compile_context>
chip_gen: v7x
topology: tpu7x:2x2x1
jax: 0.10.0
libtpu: 0.0.40
codegen_flags: <defaults>
</compile_context>

<pallas_src>
import math
import functools

import jax
import jax.numpy as jnp
from jax import lax
from jax.experimental import pallas as pl
from jax.experimental.pallas import tpu as pltpu


def _round_up(x, m):
    return -(-x // m) * m


def _attn_kernel(neg_ref, bias_ref, q_ref, k_ref, v_ref, o_ref, *, scale, chunk):
    # q_ref/k_ref/v_ref/o_ref: [Tg, GH, D] -- Tg groups of G packed (l, b) pairs
    # bias_ref:                [Tg, 1, GH] -- per-pair bias rows (column-indexed)
    # neg_ref:                 [GH, GH]    -- block-diagonal -inf mask (resident)
    neg = neg_ref[...]                       # loaded once, reused by every chunk
    tg = q_ref.shape[0]

    def process(start, size):
        # scale Q instead of the score matrix: Tg*GH*D elements instead of Tg*GH*GH
        q = q_ref[pl.ds(start, size), :, :] * scale
        k = k_ref[pl.ds(start, size), :, :]
        v = v_ref[pl.ds(start, size), :, :]
        b = bias_ref[pl.ds(start, size), :, :]            # [size, 1, GH] float32

        # scores = (Q*scale) K^T + bias_row + block_diag(-inf); full f32 precision
        s = jnp.einsum('gxd,gyd->gxy', q, k,
                       preferred_element_type=jnp.float32,
                       precision=jax.lax.Precision.HIGHEST)
        s = s + b + neg[None, :, :]

        # softmax over the packed lane axis in fp32 (matches F.softmax(dtype=float32)).
        m = jnp.max(s, axis=-1, keepdims=True)
        p = jnp.exp(s - m)
        denom = jnp.sum(p, axis=-1, keepdims=True)
        # exact reciprocal on a tiny [size, GH, 1] tensor; approx=True is a valid perf
        # option but deviates from the exact softmax divide for ~zero savings here.
        w = p * pl.reciprocal(denom, approx=False)

        # output = softmax(scores) @ V   (weights cast to query dtype, as in torch)
        o = jnp.einsum('gxy,gyd->gxd', w.astype(v.dtype), v,
                       preferred_element_type=jnp.float32,
                       precision=jax.lax.Precision.HIGHEST)
        o_ref[pl.ds(start, size), :, :] = o.astype(o_ref.dtype)

    # chunked loop bounds the score/p/w temporaries independently of the DMA block size
    n_full = tg // chunk
    rem = tg - n_full * chunk
    if n_full > 0:
        def body(c, carry):
            process(c * chunk, chunk)
            return carry
        lax.fori_loop(0, n_full, body, 0)
    if rem:
        process(n_full * chunk, rem)


def custom_dot_product_attention(query, key, value, *, num_attention_heads,
                                 kv_channels, causal=False, attention_mask=None):
    """JAX/Pallas equivalent of CustomDotProductAttention.forward
    (eval mode, dropout_p == 0, inference_params=None)."""
    L, B, H, D = query.shape
    S = key.shape[0]
    assert H == num_attention_heads and D == kv_channels
    # The literal torch code only broadcasts correctly when L == S (matmul batch
    # broadcast over the seq axis) and S == H (bias vs. [H, H] score matrix).
    assert L == S == H, "reference semantics require seq_len_q == seq_len_kv == num_heads"

    scale = 1.0 / math.sqrt(kv_channels)

    # ---- glue (plain JAX, tiny [L, S] array): build the attention bias ------------
    bias = jnp.zeros((L, S), jnp.float32)
    if causal:
        causal_mask = jnp.triu(jnp.ones((L, S), dtype=bool), k=1)
        bias = jnp.where(causal_mask, -jnp.inf, bias)
    if attention_mask is not None:
        if attention_mask.dtype == jnp.bool_:
            bias = jnp.where(jnp.logical_not(attention_mask), -jnp.inf, bias)
        else:
            bias = bias + attention_mask.astype(jnp.float32)
    # TODO(synk): dropout path (training=True, p > 0) not implemented; eval-mode forward only.

    N = L * B                                   # number of (l, b) pairs

    # ---- adaptive MXU packing: G = largest divisor of N with G*H <= 128 ------------
    # Choosing G to divide N exactly means NO padding (and therefore no full-array HBM
    # copy) is ever needed; all grouping reshapes below are free, layout-preserving.
    g_max = max(1, min(128 // max(H, 1), N))
    G = 1
    for g in range(g_max, 0, -1):
        if N % g == 0:
            G = g
            break
    GH = G * H
    NG = N // G                                 # number of packed groups (exact)

    qp = query.reshape(NG, GH, D)               # free reshapes (contiguous)
    kp = key.reshape(NG, GH, D)
    vp = value.reshape(NG, GH, D)

    # Per-pair bias rows packed lane-dense along the GH axis (pair index n = l*B + b).
    bias_rows = jnp.repeat(bias, B, axis=0)                       # [N, H], tiny
    bias_packed = bias_rows.reshape(NG, 1, GH).astype(jnp.float32)

    # Block-diagonal -inf mask (hoisted out of the kernel; resident across grid steps).
    idx = jnp.arange(GH)
    same_pair = (idx[:, None] // H) == (idx[None, :] // H)
    neg = jnp.where(same_pair, 0.0, -jnp.inf).astype(jnp.float32)

    # ---- tiling: ~1024 pairs / grid step, softmax chunked at ~1024 packed rows ------
    PAIRS_PER_BLOCK = 1024
    ROWS_PER_CHUNK = 1024
    VMEM_BUDGET = 40 * 1024 * 1024              # double-buffered IO + temps (v7x-safe)

    chunk = max(1, ROWS_PER_CHUNK // GH)        # groups per in-kernel softmax chunk
    Tg = max(1, min(PAIRS_PER_BLOCK // G, NG))  # groups per grid step
    if NG >= 2:                                 # keep >= 2 grid steps (v7x: 2 TCs)
        Tg = min(Tg, -(-NG // 2))

    itemsize = jnp.dtype(query.dtype).itemsize
    lane_d = _round_up(D, 128)                  # D=32 tiles lane-pad to 128 in VMEM
    lane_gh = _round_up(GH, 128)

    def vmem_estimate(tg):
        io = 4 * 2 * tg * GH * lane_d * itemsize            # Q/K/V/O, double-buffered
        io += 2 * tg * 8 * lane_gh * 4                      # bias blocks (sublane-padded)
        io += _round_up(GH, 8) * lane_gh * 4                # resident block-diag mask
        tmp = 8 * min(chunk, tg) * GH * lane_gh * 4         # s/p/w + chunk slices live
        return io + tmp

    while Tg > 1 and vmem_estimate(Tg) > VMEM_BUDGET:
        Tg = max(1, Tg // 2)

    grid = (pl.cdiv(NG, Tg),)                   # ragged last block: whole (discarded) groups
    vmem_limit = int(min(max(32 * 1024 * 1024, vmem_estimate(Tg) + 12 * 1024 * 1024),
                         56 * 1024 * 1024))     # stays well under v7x's 64 MiB/TC

    cost = pl.CostEstimate(
        flops=4 * NG * GH * GH * D,             # executed MXU work (incl. packing waste)
        transcendentals=NG * GH * GH,           # executed exps
        bytes_accessed=4 * N * H * D * itemsize + N * H * 4 + GH * GH * 4,
    )

    out = pl.pallas_call(
        functools.partial(_attn_kernel, scale=scale, chunk=chunk),
        out_shape=jax.ShapeDtypeStruct((NG, GH, D), query.dtype),
        grid=grid,
        in_specs=[
            pl.BlockSpec((GH, GH), lambda i: (0, 0)),          # resident block-diag mask
            pl.BlockSpec((Tg, 1, GH), lambda i: (i, 0, 0)),    # packed bias rows
            pl.BlockSpec((Tg, GH, D), lambda i: (i, 0, 0)),    # Q
            pl.BlockSpec((Tg, GH, D), lambda i: (i, 0, 0)),    # K
            pl.BlockSpec((Tg, GH, D), lambda i: (i, 0, 0)),    # V
        ],
        out_specs=pl.BlockSpec((Tg, GH, D), lambda i: (i, 0, 0)),
        compiler_params=pltpu.CompilerParams(
            dimension_semantics=("parallel",),                 # megacore shards blocks
            vmem_limit_bytes=vmem_limit,
        ),
        cost_estimate=cost,
    )(neg, bias_packed, qp, kp, vp)

    return out.reshape(L, B, H, D)              # free reshape back, no slicing needed


def _reference_jnp(query, key, value, bias, scale):
    """Pure-JAX replica of the literal torch fp32 forward (for verification)."""
    s = jnp.einsum('lbhd,lbkd->lbhk', query, key,
                   precision=jax.lax.Precision.HIGHEST)
    s = s * scale + bias[:, None, None, :]
    w = jax.nn.softmax(s.astype(jnp.float32), axis=-1).astype(query.dtype)
    return jnp.einsum('lbhk,lbkd->lbhd', w, value,
                      precision=jax.lax.Precision.HIGHEST)


def _run_case(L, B, H, D, causal, seed, attention_mask=None):
    kq, kk, kv = jax.random.split(jax.random.PRNGKey(seed), 3)
    query = jax.random.normal(kq, (L, B, H, D), dtype=jnp.float32)
    key_t = jax.random.normal(kk, (L, B, H, D), dtype=jnp.float32)
    value = jax.random.normal(kv, (L, B, H, D), dtype=jnp.float32)

    out = custom_dot_product_attention(
        query, key_t, value,
        num_attention_heads=H, kv_channels=D, causal=causal,
        attention_mask=attention_mask)
    out = jax.block_until_ready(out)

    scale = 1.0 / math.sqrt(D)
    bias = jnp.zeros((L, L), jnp.float32)
    if causal:
        bias = jnp.where(jnp.triu(jnp.ones((L, L), dtype=bool), k=1), -jnp.inf, bias)
    if attention_mask is not None:
        if attention_mask.dtype == jnp.bool_:
            bias = jnp.where(jnp.logical_not(attention_mask), -jnp.inf, bias)
        else:
            bias = bias + attention_mask.astype(jnp.float32)
    ref = _reference_jnp(query, key_t, value, bias, scale)

    assert out.shape == (L, B, H, D)
    assert out.dtype == query.dtype
    assert bool(jnp.all(jnp.isfinite(out)))
    err = float(jnp.max(jnp.abs(out - ref)))
    assert err < 2e-3, f"max abs err {err}"


if __name__ == "__main__":
    # shapes consistent with the reference forward's broadcasting constraints:
    # seq_len_q == seq_len_kv == num_attention_heads
    H = 8          # num heads == seq len
    D = 32         # kv_channels (head_dim)

    # small case: G=16 packing (GH=128), single grid step
    _run_case(L=H, B=2, H=H, D=D, causal=True, seed=0)
    # odd batch: exercises adaptive G=8 packing (GH=64), a 2-step ragged parallel grid,
    # and the in-kernel chunk loop with a remainder chunk -- with zero padding/copies
    _run_case(L=H, B=81, H=H, D=D, causal=True, seed=1)
    # non-causal + additive attention mask path
    add_mask = 0.5 * jax.random.normal(jax.random.PRNGKey(0), (H, H), dtype=jnp.float32)
    _run_case(L=H, B=4, H=H, D=D, causal=False, seed=3, attention_mask=add_mask)

    print("KERNEL_OK")
</pallas_src>

<mosaic_0001>
module attributes {stable_mosaic.version = 11 : i64} {
  func.func @_attn_kernel(%arg0: i32, %arg1: memref<128x128xf32, #tpu.memory_space<vmem>>, %arg2: memref<1x1x128xf32, #tpu.memory_space<vmem>>, %arg3: memref<1x128x32xf32, #tpu.memory_space<vmem>>, %arg4: memref<1x128x32xf32, #tpu.memory_space<vmem>>, %arg5: memref<1x128x32xf32, #tpu.memory_space<vmem>>, %arg6: memref<1x128x32xf32, #tpu.memory_space<vmem>>) attributes {dimension_semantics = [#tpu.dimension_semantics<parallel>], iteration_bounds = array<i64: 1>, scalar_prefetch = 0 : i64, scratch_operands = 0 : i64, tpu.core_type = #tpu.core_type<tc>, window_params = [{pipeline_mode = #tpu.pipeline_mode<synchronous>, transform_indices = @transform_0, window_bounds = array<i64: 128, 128>}, {transform_indices = @transform_1, window_bounds = array<i64: 1, 1, 128>}, {transform_indices = @transform_2, window_bounds = array<i64: 1, 128, 32>}, {transform_indices = @transform_3, window_bounds = array<i64: 1, 128, 32>}, {transform_indices = @transform_4, window_bounds = array<i64: 1, 128, 32>}, {transform_indices = @transform_5, window_bounds = array<i64: 1, 128, 32>}]} {
    %c0 = arith.constant 0 : index
    %c0_0 = arith.constant 0 : index
    %0 = vector.load %arg1[%c0, %c0_0] : memref<128x128xf32, #tpu.memory_space<vmem>>, vector<128x128xf32>
    %c0_1 = arith.constant 0 : index
    %c0_2 = arith.constant 0 : index
    %c0_3 = arith.constant 0 : index
    %1 = vector.load %arg3[%c0_1, %c0_2, %c0_3] : memref<1x128x32xf32, #tpu.memory_space<vmem>>, vector<1x128x32xf32>
    %cst = arith.constant 0.176776692 : f32
    %2 = vector.broadcast %cst : f32 to vector<1x128x32xf32>
    %3 = arith.mulf %1, %2 : vector<1x128x32xf32>
    %c0_4 = arith.constant 0 : index
    %c0_5 = arith.constant 0 : index
    %c0_6 = arith.constant 0 : index
    %4 = vector.load %arg4[%c0_4, %c0_5, %c0_6] : memref<1x128x32xf32, #tpu.memory_space<vmem>>, vector<1x128x32xf32>
    %c0_7 = arith.constant 0 : index
    %c0_8 = arith.constant 0 : index
    %c0_9 = arith.constant 0 : index
    %5 = vector.load %arg5[%c0_7, %c0_8, %c0_9] : memref<1x128x32xf32, #tpu.memory_space<vmem>>, vector<1x128x32xf32>
    %c0_10 = arith.constant 0 : index
    %c0_11 = arith.constant 0 : index
    %c0_12 = arith.constant 0 : index
    %6 = vector.load %arg2[%c0_10, %c0_11, %c0_12] : memref<1x1x128xf32, #tpu.memory_space<vmem>>, vector<1x1x128xf32>
    "tpu.trace_start"() <{level = 10 : i32, message = "gxd,gyd->gxy"}> : () -> ()
    %cst_13 = arith.constant dense<0.000000e+00> : vector<1x128x128xf32>
    %7 = tpu.matmul %3, %4, %cst_13 {dimension_numbers = #tpu.dot_dimension_numbers<[2], [2], [1], [1], [0, 0, 0, 1, 1, 1], [0], [0]>, precision = #tpu.contract_precision<fp32>} : vector<1x128x32xf32>, vector<1x128x32xf32>, vector<1x128x128xf32> -> vector<1x128x128xf32>
    "tpu.trace_stop"() : () -> ()
    %8 = vector.broadcast %6 : vector<1x1x128xf32> to vector<1x128x128xf32>
    %9 = arith.addf %7, %8 : vector<1x128x128xf32>
    %10 = vector.shape_cast %0 : vector<128x128xf32> to vector<1x128x128xf32>
    %11 = arith.addf %9, %10 : vector<1x128x128xf32>
    %cst_14 = arith.constant dense<0xFF800000> : vector<1x128xf32>
    %12 = vector.multi_reduction <maximumf>, %11, %cst_14 [2] : vector<1x128x128xf32> to vector<1x128xf32>
    %13 = vector.shape_cast %12 : vector<1x128xf32> to vector<1x128x1xf32>
    %14 = vector.broadcast %13 : vector<1x128x1xf32> to vector<1x128x128xf32>
    %15 = arith.subf %11, %14 : vector<1x128x128xf32>
    %16 = math.exp %15 : vector<1x128x128xf32>
    %cst_15 = arith.constant dense<0.000000e+00> : vector<1x128xf32>
    %17 = vector.multi_reduction <add>, %16, %cst_15 [2] : vector<1x128x128xf32> to vector<1x128xf32>
    %18 = vector.shape_cast %17 : vector<1x128xf32> to vector<1x128x1xf32>
    %19 = tpu.reciprocal %18 : vector<1x128x1xf32> -> vector<1x128x1xf32>
    %20 = vector.broadcast %19 : vector<1x128x1xf32> to vector<1x128x128xf32>
    %21 = arith.mulf %16, %20 : vector<1x128x128xf32>
    "tpu.trace_start"() <{level = 10 : i32, message = "gxy,gyd->gxd"}> : () -> ()
    %cst_16 = arith.constant dense<0.000000e+00> : vector<1x128x32xf32>
    %22 = tpu.matmul %21, %5, %cst_16 {dimension_numbers = #tpu.dot_dimension_numbers<[2], [1], [1], [2], [0, 0, 0, 1, 1, 2], [0], [0]>, precision = #tpu.contract_precision<fp32>} : vector<1x128x128xf32>, vector<1x128x32xf32>, vector<1x128x32xf32> -> vector<1x128x32xf32>
    "tpu.trace_stop"() : () -> ()
    %c0_17 = arith.constant 0 : index
    %c0_18 = arith.constant 0 : index
    %c0_19 = arith.constant 0 : index
    %23 = vector.load %arg6[%c0_17, %c0_18, %c0_19] : memref<1x128x32xf32, #tpu.memory_space<vmem>>, vector<1x128x32xf32>
    tpu.vector_store %arg6[%c0_17, %c0_18, %c0_19], %22 {strides = array<i32>} : memref<1x128x32xf32, #tpu.memory_space<vmem>>, vector<1x128x32xf32>,
    return
  }
  func.func @transform_0(%arg0: i32) -> (i32, i32) {
    %c0_i32 = arith.constant 0 : i32
    %c0_i32_0 = arith.constant 0 : i32
    %c0_i32_1 = arith.constant 0 : i32
    return %c0_i32, %c0_i32_0 : i32, i32
  }
  func.func @transform_1(%arg0: i32) -> (i32, i32, i32) {
    %c0_i32 = arith.constant 0 : i32
    %c0_i32_0 = arith.constant 0 : i32
    %c0_i32_1 = arith.constant 0 : i32
    return %arg0, %c0_i32, %c0_i32_0 : i32, i32, i32
  }
  func.func @transform_2(%arg0: i32) -> (i32, i32, i32) {
    %c0_i32 = arith.constant 0 : i32
    %c0_i32_0 = arith.constant 0 : i32
    %c0_i32_1 = arith.constant 0 : i32
    return %arg0, %c0_i32, %c0_i32_0 : i32, i32, i32
  }
  func.func @transform_3(%arg0: i32) -> (i32, i32, i32) {
    %c0_i32 = arith.constant 0 : i32
    %c0_i32_0 = arith.constant 0 : i32
    %c0_i32_1 = arith.constant 0 : i32
    return %arg0, %c0_i32, %c0_i32_0 : i32, i32, i32
  }
  func.func @transform_4(%arg0: i32) -> (i32, i32, i32) {
    %c0_i32 = arith.constant 0 : i32
    %c0_i32_0 = arith.constant 0 : i32
    %c0_i32_1 = arith.constant 0 : i32
    return %arg0, %c0_i32, %c0_i32_0 : i32, i32, i32
  }
  func.func @transform_5(%arg0: i32) -> (i32, i32, i32) {
    %c0_i32 = arith.constant 0 : i32
    %c0_i32_0 = arith.constant 0 : i32
    %c0_i32_1 = arith.constant 0 : i32
    return %arg0, %c0_i32, %c0_i32_0 : i32, i32, i32
  }
}

</mosaic_0001>

<llo_original>
// kernel: tpu_custom_call.1
$region0: #{tpu_custom_call.1}
  #allocation0 [shape = 'u32[]', space=smem, size = 0x4, offset = 0x4, fixed_abs, tag = 'smem constant byte address 0x4 - core index']
  #allocation1 [shape = 'u32[144,128]{1,0:T(1,128)}', space=vmem, size = 0x12000, scoped, tag = 'internal scratch']
  %s0 = inlined_call_operand.vmem [shape: f32[128,128], index: 0, kind: input, shape index: {}]
  %s1 = inlined_call_operand.vmem [shape: f32[1,1,128], index: 1, kind: input, shape index: {}]
  %s2 = inlined_call_operand.vmem [shape: f32[1,128,32], index: 2, kind: input, shape index: {}]
  %s3 = inlined_call_operand.vmem [shape: f32[1,128,32], index: 3, kind: input, shape index: {}]
  %s4 = inlined_call_operand.vmem [shape: f32[1,128,32], index: 4, kind: input, shape index: {}]
  %s5 = inlined_call_operand.vmem [shape: f32[1,128,32], index: 5, kind: output, shape index: {}]
  %s6 = sld [smem:[#allocation0]]
  $region30: #{tpu_custom_call.1} parent=0
    _
  %s8 = ssub.s32 1, %s6
  %s9 = scalar_select 0, %s8, %s6
  // Predicated region
  $region2: #{tpu_custom_call.1} parent=0 // pred_check
    _
  $region3: #{tpu_custom_call.1} parent=0 // pred_check_branch
    %11 = sbr.rel (0) target = $region5
  $region4: #{tpu_custom_call.1} parent=0 // pred_region
    _
  $region5: #{tpu_custom_call.1} parent=0 // pred_fallthru
    _
  // Predicated region
  $region6: #{tpu_custom_call.1} parent=0 // pred_check
    _
  $region7: #{tpu_custom_call.1} parent=0 // pred_check_branch
    %13 = sbr.rel (0) target = $region9
  $region8: #{tpu_custom_call.1} parent=0 // pred_region
    _
  $region9: #{tpu_custom_call.1} parent=0 // pred_fallthru
    _
  // Predicated region
  $region10: #{tpu_custom_call.1} parent=0 // pred_check
    _
  $region11: #{tpu_custom_call.1} parent=0 // pred_check_branch
    %15 = sbr.rel (0) target = $region13
  $region12: #{tpu_custom_call.1} parent=0 // pred_region
    _
  $region13: #{tpu_custom_call.1} parent=0 // pred_fallthru
    _
  // Predicated region
  $region14: #{tpu_custom_call.1} parent=0 // pred_check
    _
  $region15: #{tpu_custom_call.1} parent=0 // pred_check_branch
    %17 = sbr.rel (0) target = $region17
  $region16: #{tpu_custom_call.1} parent=0 // pred_region
    _
  $region17: #{tpu_custom_call.1} parent=0 // pred_fallthru
    _
  // Predicated region
  $region18: #{tpu_custom_call.1} parent=0 // pred_check
    _
  $region19: #{tpu_custom_call.1} parent=0 // pred_check_branch
    %19 = sbr.rel (0) target = $region21
  $region20: #{tpu_custom_call.1} parent=0 // pred_region
    _
  $region21: #{tpu_custom_call.1} parent=0 // pred_fallthru
    _
  %v20 = vld [vmem:[%s0] sm:$0xff]
  %v21 = vld [vmem:[%s0 + $0x8] sm:$0xff]
  %v22 = vld [vmem:[%s0 + $0x10] sm:$0xff]
  %v23 = vld [vmem:[%s0 + $0x18] sm:$0xff]
  %v24 = vld [vmem:[%s0 + $0x20] sm:$0xff]
  %v25 = vld [vmem:[%s0 + $0x28] sm:$0xff]
  %v26 = vld [vmem:[%s0 + $0x30] sm:$0xff]
  %v27 = vld [vmem:[%s0 + $0x38] sm:$0xff]
  %v28 = vld [vmem:[%s0 + $0x40] sm:$0xff]
  %v29 = vld [vmem:[%s0 + $0x48] sm:$0xff]
  %v30 = vld [vmem:[%s0 + $0x50] sm:$0xff]
  %v31 = vld [vmem:[%s0 + $0x58] sm:$0xff]
  %v32 = vld [vmem:[%s0 + $0x60] sm:$0xff]
  %v33 = vld [vmem:[%s0 + $0x68] sm:$0xff]
  %v34 = vld [vmem:[%s0 + $0x70] sm:$0xff]
  %v35 = vld [vmem:[%s0 + $0x78] sm:$0xff]
  %v36 = vld [vmem:[%s2] sm:$0xff]
  %v37 = vld [vmem:[%s2 + $0x8] sm:$0xff]
  %v38 = vld [vmem:[%s2 + $0x10] sm:$0xff]
  %v39 = vld [vmem:[%s2 + $0x18] sm:$0xff]
  %v40 = vld [vmem:[%s2 + $0x20] sm:$0xff]
  %v41 = vld [vmem:[%s2 + $0x28] sm:$0xff]
  %v42 = vld [vmem:[%s2 + $0x30] sm:$0xff]
  %v43 = vld [vmem:[%s2 + $0x38] sm:$0xff]
  %v44 = vld [vmem:[%s2 + $0x40] sm:$0xff]
  %v45 = vld [vmem:[%s2 + $0x48] sm:$0xff]
  %v46 = vld [vmem:[%s2 + $0x50] sm:$0xff]
  %v47 = vld [vmem:[%s2 + $0x58] sm:$0xff]
  %v48 = vld [vmem:[%s2 + $0x60] sm:$0xff]
  %v49 = vld [vmem:[%s2 + $0x68] sm:$0xff]
  %v50 = vld [vmem:[%s2 + $0x70] sm:$0xff]
  %v51 = vld [vmem:[%s2 + $0x78] sm:$0xff]
  %v52 = vmul.f32 %v36, 0.17677669
  %v53 = vmul.f32 %v37, 0.17677669
  %v54 = vmul.f32 %v38, 0.17677669
  %v55 = vmul.f32 %v39, 0.17677669
  %v56 = vmul.f32 %v40, 0.17677669
  %v57 = vmul.f32 %v41, 0.17677669
  %v58 = vmul.f32 %v42, 0.17677669
  %v59 = vmul.f32 %v43, 0.17677669
  %v60 = vmul.f32 %v44, 0.17677669
  %v61 = vmul.f32 %v45, 0.17677669
  %v62 = vmul.f32 %v46, 0.17677669
  %v63 = vmul.f32 %v47, 0.17677669
  %v64 = vmul.f32 %v48, 0.17677669
  %v65 = vmul.f32 %v49, 0.17677669
  %v66 = vmul.f32 %v50, 0.17677669
  %v67 = vmul.f32 %v51, 0.17677669
  %v68 = vld [vmem:[%s3] sm:$0xff]
  %v69 = vld [vmem:[%s3 + $0x8] sm:$0xff]
  %v70 = vld [vmem:[%s3 + $0x10] sm:$0xff]
  %v71 = vld [vmem:[%s3 + $0x18] sm:$0xff]
  %v72 = vld [vmem:[%s3 + $0x20] sm:$0xff]
  %v73 = vld [vmem:[%s3 + $0x28] sm:$0xff]
  %v74 = vld [vmem:[%s3 + $0x30] sm:$0xff]
  %v75 = vld [vmem:[%s3 + $0x38] sm:$0xff]
  %v76 = vld [vmem:[%s3 + $0x40] sm:$0xff]
  %v77 = vld [vmem:[%s3 + $0x48] sm:$0xff]
  %v78 = vld [vmem:[%s3 + $0x50] sm:$0xff]
  %v79 = vld [vmem:[%s3 + $0x58] sm:$0xff]
  %v80 = vld [vmem:[%s3 + $0x60] sm:$0xff]
  %v81 = vld [vmem:[%s3 + $0x68] sm:$0xff]
  %v82 = vld [vmem:[%s3 + $0x70] sm:$0xff]
  %v83 = vld [vmem:[%s3 + $0x78] sm:$0xff]
  %v84 = vld [vmem:[%s4] sm:$0xff]
  %v85 = vld [vmem:[%s4 + $0x8] sm:$0xff]
  %v86 = vld [vmem:[%s4 + $0x10] sm:$0xff]
  %v87 = vld [vmem:[%s4 + $0x18] sm:$0xff]
  %v88 = vld [vmem:[%s4 + $0x20] sm:$0xff]
  %v89 = vld [vmem:[%s4 + $0x28] sm:$0xff]
  %v90 = vld [vmem:[%s4 + $0x30] sm:$0xff]
  %v91 = vld [vmem:[%s4 + $0x38] sm:$0xff]
  %v92 = vld [vmem:[%s4 + $0x40] sm:$0xff]
  %v93 = vld [vmem:[%s4 + $0x48] sm:$0xff]
  %v94 = vld [vmem:[%s4 + $0x50] sm:$0xff]
  %v95 = vld [vmem:[%s4 + $0x58] sm:$0xff]
  %v96 = vld [vmem:[%s4 + $0x60] sm:$0xff]
  %v97 = vld [vmem:[%s4 + $0x68] sm:$0xff]
  %v98 = vld [vmem:[%s4 + $0x70] sm:$0xff]
  %v99 = vld [vmem:[%s4 + $0x78] sm:$0xff]
  %v100 = vld [vmem:[%s1] sm:$0x1]
  %v102 = vlaneseq
  %v103 = vshrl.u32 %v102, 7
  %v104 = vsub.s32 0, %v103
  %v105 = vrot.slane %v100, %v104
  %vm107 = vcmask 261120
  %v109 = vsel %vm107, %v52, 0
  %v112 = vsel %vm107, %v53, 0
  %v115 = vsel %vm107, %v54, 0
  %v118 = vsel %vm107, %v55, 0
  %v121 = vsel %vm107, %v56, 0
  %v124 = vsel %vm107, %v57, 0
  %v127 = vsel %vm107, %v58, 0
  %v130 = vsel %vm107, %v59, 0
  %v133 = vsel %vm107, %v60, 0
  %v136 = vsel %vm107, %v61, 0
  %v139 = vsel %vm107, %v62, 0
  %v142 = vsel %vm107, %v63, 0
  %v145 = vsel %vm107, %v64, 0
  %v148 = vsel %vm107, %v65, 0
  %v151 = vsel %vm107, %v66, 0
  %v154 = vsel %vm107, %v67, 0
  %v157 = vsel %vm107, %v68, 0
  %v160 = vsel %vm107, %v69, 0
  %v163 = vsel %vm107, %v70, 0
  %v166 = vsel %vm107, %v71, 0
  %v169 = vsel %vm107, %v72, 0
  %v172 = vsel %vm107, %v73, 0
  %v175 = vsel %vm107, %v74, 0
  %v178 = vsel %vm107, %v75, 0
  %v181 = vsel %vm107, %v76, 0
  %v184 = vsel %vm107, %v77, 0
  %v187 = vsel %vm107, %v78, 0
  %v190 = vsel %vm107, %v79, 0
  %v193 = vsel %vm107, %v80, 0
  %v196 = vsel %vm107, %v81, 0
  %v199 = vsel %vm107, %v82, 0
  %v202 = vsel %vm107, %v83, 0
  %204 = vmatprep.subr.mxu0 0.0
  %v205 = vand.u32 %v157, 4294901760
  %206 = vmatpush1.xpose.msra.mxu0 %v205
  %207 = vmatprep.subr.mxu0 0.0
  %v208 = vand.u32 %v160, 4294901760
  %209 = vmatpush1.xpose.msra.mxu0 %v208
  %210 = vmatprep.subr.mxu0 0.0
  %v211 = vand.u32 %v163, 4294901760
  %212 = vmatpush1.xpose.msra.mxu0 %v211
  %213 = vmatprep.subr.mxu0 0.0
  %v214 = vand.u32 %v166, 4294901760
  %215 = vmatpush1.xpose.msra.mxu0 %v214
  %216 = vmatprep.subr.mxu0 0.0
  %v217 = vand.u32 %v169, 4294901760
  %218 = vmatpush1.xpose.msra.mxu0 %v217
  %219 = vmatprep.subr.mxu0 0.0
  %v220 = vand.u32 %v172, 4294901760
  %221 = vmatpush1.xpose.msra.mxu0 %v220
  %222 = vmatprep.subr.mxu0 0.0
  %v223 = vand.u32 %v175, 4294901760
  %224 = vmatpush1.xpose.msra.mxu0 %v223
  %225 = vmatprep.subr.mxu0 0.0
  %v226 = vand.u32 %v178, 4294901760
  %227 = vmatpush1.xpose.msra.mxu0 %v226
  %228 = vmatprep.subr.mxu0 0.0
  %v229 = vand.u32 %v181, 4294901760
  %230 = vmatpush1.xpose.msra.mxu0 %v229
  %231 = vmatprep.subr.mxu0 0.0
  %v232 = vand.u32 %v184, 4294901760
  %233 = vmatpush1.xpose.msra.mxu0 %v232
  %234 = vmatprep.subr.mxu0 0.0
  %v235 = vand.u32 %v187, 4294901760
  %236 = vmatpush1.xpose.msra.mxu0 %v235
  %237 = vmatprep.subr.mxu0 0.0
  %v238 = vand.u32 %v190, 4294901760
  %239 = vmatpush1.xpose.msra.mxu0 %v238
  %240 = vmatprep.subr.mxu0 0.0
  %v241 = vand.u32 %v193, 4294901760
  %242 = vmatpush1.xpose.msra.mxu0 %v241
  %243 = vmatprep.subr.mxu0 0.0
  %v244 = vand.u32 %v196, 4294901760
  %245 = vmatpush1.xpose.msra.mxu0 %v244
  %246 = vmatprep.subr.mxu0 0.0
  %v247 = vand.u32 %v199, 4294901760
  %248 = vmatpush1.xpose.msra.mxu0 %v247
  %249 = vmatprep.subr.mxu0 0.0
  %v250 = vand.u32 %v202, 4294901760
  %251 = vmatpush1.xpose.msra.mxu0 %v250
  %252 = vmatprep.subr.mxu0 0.0
  %253 = vmatpush1.xpose.msra.mxu0 0.0
  %254 = vmatprep.subr.mxu0 0.0
  %255 = vmatpush1.xpose.msra.mxu0 0.0
  %256 = vmatprep.subr.mxu0 0.0
  %257 = vmatpush1.xpose.msra.mxu0 0.0
  %258 = vmatprep.subr.mxu0 0.0
  %259 = vmatpush1.xpose.msra.mxu0 0.0
  %260 = vmatprep.subr.mxu0 0.0
  %261 = vmatpush1.xpose.msra.mxu0 0.0
  %262 = vmatprep.subr.mxu0 0.0
  %263 = vmatpush1.xpose.msra.mxu0 0.0
  %264 = vmatprep.subr.mxu0 0.0
  %265 = vmatpush1.xpose.msra.mxu0 0.0
  %266 = vmatprep.subr.mxu0 0.0
  %267 = vmatpush1.xpose.msra.mxu0 0.0
  %268 = vmatprep.subr.mxu0 0.0
  %269 = vmatpush1.xpose.msra.mxu0 0.0
  %270 = vmatprep.subr.mxu0 0.0
  %271 = vmatpush1.xpose.msra.mxu0 0.0
  %272 = vmatprep.subr.mxu0 0.0
  %273 = vmatpush1.xpose.msra.mxu0 0.0
  %274 = vmatprep.subr.mxu0 0.0
  %275 = vmatpush1.xpose.msra.mxu0 0.0
  %276 = vmatprep.subr.mxu0 0.0
  %277 = vmatpush1.xpose.msra.mxu0 0.0
  %278 = vmatprep.subr.mxu0 0.0
  %279 = vmatpush1.xpose.msra.mxu0 0.0
  %280 = vmatprep.subr.mxu0 0.0
  %281 = vmatpush1.xpose.msra.mxu0 0.0
  %282 = vmatprep.subr.mxu0 0.0
  %283 = vmatpush1.xpose.msra.mxu0 0.0
  %284 = vmatprep.mubr.f32.mxu0 0.0
  %v285 = vand.u32 %v109, 4294901760
  %v286 = vsub.f32 %v109, %v285
  %v287 = vand.u32 %v286, 4294901760
  %v288 = vsub.f32 %v286, %v287
  %v289 = vand.u32 %v288, 4294901760
  %290 = vmatmul.mubr.f32.gmra.mrb[0].mxu0 %v289
  %v291 = vpop.f32.mrb[0].mxu0
  %v292 = vadd.f32 %v105, %v291
  %v293 = vpop.f32.mrb[0].mxu0
  %294 = vmatprep.mubr.f32.mxu0 0.0
  %v295 = vand.u32 %v112, 4294901760
  %v296 = vsub.f32 %v112, %v295
  %v297 = vand.u32 %v296, 4294901760
  %v298 = vsub.f32 %v296, %v297
  %v299 = vand.u32 %v298, 4294901760
  %300 = vmatmul.mubr.f32.gmra.mrb[0].mxu0 %v299
  %v301 = vpop.f32.mrb[0].mxu0
  %v302 = vadd.f32 %v105, %v301
  %v303 = vpop.f32.mrb[0].mxu0
  %304 = vmatprep.mubr.f32.mxu0 0.0
  %v305 = vand.u32 %v115, 4294901760
  %v306 = vsub.f32 %v115, %v305
  %v307 = vand.u32 %v306, 4294901760
  %v308 = vsub.f32 %v306, %v307
  %v309 = vand.u32 %v308, 4294901760
  %310 = vmatmul.mubr.f32.gmra.mrb[0].mxu0 %v309
  %v311 = vpop.f32.mrb[0].mxu0
  %v312 = vadd.f32 %v105, %v311
  %v313 = vpop.f32.mrb[0].mxu0
  %314 = vmatprep.mubr.f32.mxu0 0.0
  %v315 = vand.u32 %v118, 4294901760
  %v316 = vsub.f32 %v118, %v315
  %v317 = vand.u32 %v316, 4294901760
  %v318 = vsub.f32 %v316, %v317
  %v319 = vand.u32 %v318, 4294901760
  %320 = vmatmul.mubr.f32.gmra.mrb[0].mxu0 %v319
  %v321 = vpop.f32.mrb[0].mxu0
  %v322 = vadd.f32 %v105, %v321
  %v323 = vpop.f32.mrb[0].mxu0
  %324 = vmatprep.mubr.f32.mxu0 0.0
  %v325 = vand.u32 %v121, 4294901760
  %v326 = vsub.f32 %v121, %v325
  %v327 = vand.u32 %v326, 4294901760
  %v328 = vsub.f32 %v326, %v327
  %v329 = vand.u32 %v328, 4294901760
  %330 = vmatmul.mubr.f32.gmra.mrb[0].mxu0 %v329
  %v331 = vpop.f32.mrb[0].mxu0
  %v332 = vadd.f32 %v105, %v331
  %v333 = vpop.f32.mrb[0].mxu0
  %334 = vmatprep.mubr.f32.mxu0 0.0
  %v335 = vand.u32 %v124, 4294901760
  %v336 = vsub.f32 %v124, %v335
  %v337 = vand.u32 %v336, 4294901760
  %v338 = vsub.f32 %v336, %v337
  %v339 = vand.u32 %v338, 4294901760
  %340 = vmatmul.mubr.f32.gmra.mrb[0].mxu0 %v339
  %v341 = vpop.f32.mrb[0].mxu0
  %v342 = vadd.f32 %v105, %v341
  %v343 = vpop.f32.mrb[0].mxu0
  %344 = vmatprep.mubr.f32.mxu0 0.0
  %v345 = vand.u32 %v127, 4294901760
  %v346 = vsub.f32 %v127, %v345
  %v347 = vand.u32 %v346, 4294901760
  %v348 = vsub.f32 %v346, %v347
  %v349 = vand.u32 %v348, 4294901760
  %350 = vmatmul.mubr.f32.gmra.mrb[0].mxu0 %v349
  %v351 = vpop.f32.mrb[0].mxu0
  %v352 = vadd.f32 %v105, %v351
  %v353 = vpop.f32.mrb[0].mxu0
  %354 = vmatprep.mubr.f32.mxu0 0.0
  %v355 = vand.u32 %v130, 4294901760
  %v356 = vsub.f32 %v130, %v355
  %v357 = vand.u32 %v356, 4294901760
  %v358 = vsub.f32 %v356, %v357
  %v359 = vand.u32 %v358, 4294901760
  %360 = vmatmul.mubr.f32.gmra.mrb[0].mxu0 %v359
  %v361 = vpop.f32.mrb[0].mxu0
  %v362 = vadd.f32 %v105, %v361
  %v363 = vpop.f32.mrb[0].mxu0
  %364 = vmatprep.mubr.f32.mxu0 0.0
  %v365 = vand.u32 %v133, 4294901760
  %v366 = vsub.f32 %v133, %v365
  %v367 = vand.u32 %v366, 4294901760
  %v368 = vsub.f32 %v366, %v367
  %v369 = vand.u32 %v368, 4294901760
  %370 = vmatmul.mubr.f32.gmra.mrb[0].mxu0 %v369
  %v371 = vpop.f32.mrb[0].mxu0
  %v372 = vadd.f32 %v105, %v371
  %v373 = vpop.f32.mrb[0].mxu0
  %374 = vmatprep.mubr.f32.mxu0 0.0
  %v375 = vand.u32 %v136, 4294901760
  %v376 = vsub.f32 %v136, %v375
  %v377 = vand.u32 %v376, 4294901760
  %v378 = vsub.f32 %v376, %v377
  %v379 = vand.u32 %v378, 4294901760
  %380 = vmatmul.mubr.f32.gmra.mrb[0].mxu0 %v379
  %v381 = vpop.f32.mrb[0].mxu0
  %v382 = vadd.f32 %v105, %v381
  %v383 = vpop.f32.mrb[0].mxu0
  %384 = vmatprep.mubr.f32.mxu0 0.0
  %v385 = vand.u32 %v139, 4294901760
  %v386 = vsub.f32 %v139, %v385
  %v387 = vand.u32 %v386, 4294901760
  %v388 = vsub.f32 %v386, %v387
  %v389 = vand.u32 %v388, 4294901760
  %390 = vmatmul.mubr.f32.gmra.mrb[0].mxu0 %v389
  %v391 = vpop.f32.mrb[0].mxu0
  %v392 = vadd.f32 %v105, %v391
  %v393 = vpop.f32.mrb[0].mxu0
  %394 = vmatprep.mubr.f32.mxu0 0.0
  %v395 = vand.u32 %v142, 4294901760
  %v396 = vsub.f32 %v142, %v395
  %v397 = vand.u32 %v396, 4294901760
  %v398 = vsub.f32 %v396, %v397
  %v399 = vand.u32 %v398, 4294901760
  %400 = vmatmul.mubr.f32.gmra.mrb[0].mxu0 %v399
  %v401 = vpop.f32.mrb[0].mxu0
  %v402 = vadd.f32 %v105, %v401
  %v403 = vpop.f32.mrb[0].mxu0
  %404 = vmatprep.mubr.f32.mxu0 0.0
  %v405 = vand.u32 %v145, 4294901760
  %v406 = vsub.f32 %v145, %v405
  %v407 = vand.u32 %v406, 4294901760
  %v408 = vsub.f32 %v406, %v407
  %v409 = vand.u32 %v408, 4294901760
  %410 = vmatmul.mubr.f32.gmra.mrb[0].mxu0 %v409
  %v411 = vpop.f32.mrb[0].mxu0
  %v412 = vadd.f32 %v105, %v411
  %v413 = vpop.f32.mrb[0].mxu0
  %414 = vmatprep.mubr.f32.mxu0 0.0
  %v415 = vand.u32 %v148, 4294901760
  %v416 = vsub.f32 %v148, %v415
  %v417 = vand.u32 %v416, 4294901760
  %v418 = vsub.f32 %v416, %v417
  %v419 = vand.u32 %v418, 4294901760
  %420 = vmatmul.mubr.f32.gmra.mrb[0].mxu0 %v419
  %v421 = vpop.f32.mrb[0].mxu0
  %v422 = vadd.f32 %v105, %v421
  %v423 = vpop.f32.mrb[0].mxu0
  %424 = vmatprep.mubr.f32.mxu0 0.0
  %v425 = vand.u32 %v151, 4294901760
  %v426 = vsub.f32 %v151, %v425
  %v427 = vand.u32 %v426, 4294901760
  %v428 = vsub.f32 %v426, %v427
  %v429 = vand.u32 %v428, 4294901760
  %430 = vmatmul.mubr.f32.gmra.mrb[0].mxu0 %v429
  %v431 = vpop.f32.mrb[0].mxu0
  %v432 = vadd.f32 %v105, %v431
  %v433 = vpop.f32.mrb[0].mxu0
  %434 = vmatprep.mubr.f32.mxu0 0.0
  %v435 = vand.u32 %v154, 4294901760
  %v436 = vsub.f32 %v154, %v435
  %v437 = vand.u32 %v436, 4294901760
  %v438 = vsub.f32 %v436, %v437
  %v439 = vand.u32 %v438, 4294901760
  %440 = vmatmul.mubr.f32.gmra.mrb[0].mxu0 %v439
  %v441 = vpop.f32.mrb[0].mxu0
  %v442 = vadd.f32 %v105, %v441
  %v443 = vpop.f32.mrb[0].mxu0
  %444 = vdwg.mxu0
  %445 = vmatprep.subr.mxu0 0.0
  %v446 = vand.u32 %v157, 4294901760
  %v447 = vsub.f32 %v157, %v446
  %v448 = vand.u32 %v447, 4294901760
  %v449 = vsub.f32 %v447, %v448
  %v450 = vand.u32 %v449, 4294901760
  %451 = vmatpush1.xpose.msra.mxu0 %v450
  %452 = vmatprep.subr.mxu0 0.0
  %v453 = vand.u32 %v160, 4294901760
  %v454 = vsub.f32 %v160, %v453
  %v455 = vand.u32 %v454, 4294901760
  %v456 = vsub.f32 %v454, %v455
  %v457 = vand.u32 %v456, 4294901760
  %458 = vmatpush1.xpose.msra.mxu0 %v457
  %459 = vmatprep.subr.mxu0 0.0
  %v460 = vand.u32 %v163, 4294901760
  %v461 = vsub.f32 %v163, %v460
  %v462 = vand.u32 %v461, 4294901760
  %v463 = vsub.f32 %v461, %v462
  %v464 = vand.u32 %v463, 4294901760
  %465 = vmatpush1.xpose.msra.mxu0 %v464
  %466 = vmatprep.subr.mxu0 0.0
  %v467 = vand.u32 %v166, 4294901760
  %v468 = vsub.f32 %v166, %v467
  %v469 = vand.u32 %v468, 4294901760
  %v470 = vsub.f32 %v468, %v469
  %v471 = vand.u32 %v470, 4294901760
  %472 = vmatpush1.xpose.msra.mxu0 %v471
  %473 = vmatprep.subr.mxu0 0.0
  %v474 = vand.u32 %v169, 4294901760
  %v475 = vsub.f32 %v169, %v474
  %v476 = vand.u32 %v475, 4294901760
  %v477 = vsub.f32 %v475, %v476
  %v478 = vand.u32 %v477, 4294901760
  %479 = vmatpush1.xpose.msra.mxu0 %v478
  %480 = vmatprep.subr.mxu0 0.0
  %v481 = vand.u32 %v172, 4294901760
  %v482 = vsub.f32 %v172, %v481
  %v483 = vand.u32 %v482, 4294901760
  %v484 = vsub.f32 %v482, %v483
  %v485 = vand.u32 %v484, 4294901760
  %486 = vmatpush1.xpose.msra.mxu0 %v485
  %487 = vmatprep.subr.mxu0 0.0
  %v488 = vand.u32 %v175, 4294901760
  %v489 = vsub.f32 %v175, %v488
  %v490 = vand.u32 %v489, 4294901760
  %v491 = vsub.f32 %v489, %v490
  %v492 = vand.u32 %v491, 4294901760
  %493 = vmatpush1.xpose.msra.mxu0 %v492
  %494 = vmatprep.subr.mxu0 0.0
  %v495 = vand.u32 %v178, 4294901760
  %v496 = vsub.f32 %v178, %v495
  %v497 = vand.u32 %v496, 4294901760
  %v498 = vsub.f32 %v496, %v497
  %v499 = vand.u32 %v498, 4294901760
  %500 = vmatpush1.xpose.msra.mxu0 %v499
  %501 = vmatprep.subr.mxu0 0.0
  %v502 = vand.u32 %v181, 4294901760
  %v503 = vsub.f32 %v181, %v502
  %v504 = vand.u32 %v503, 4294901760
  %v505 = vsub.f32 %v503, %v504
  %v506 = vand.u32 %v505, 4294901760
  %507 = vmatpush1.xpose.msra.mxu0 %v506
  %508 = vmatprep.subr.mxu0 0.0
  %v509 = vand.u32 %v184, 4294901760
  %v510 = vsub.f32 %v184, %v509
  %v511 = vand.u32 %v510, 4294901760
  %v512 = vsub.f32 %v510, %v511
  %v513 = vand.u32 %v512, 4294901760
  %514 = vmatpush1.xpose.msra.mxu0 %v513
  %515 = vmatprep.subr.mxu0 0.0
  %v516 = vand.u32 %v187, 4294901760
  %v517 = vsub.f32 %v187, %v516
  %v518 = vand.u32 %v517, 4294901760
  %v519 = vsub.f32 %v517, %v518
  %v520 = vand.u32 %v519, 4294901760
  %521 = vmatpush1.xpose.msra.mxu0 %v520
  %522 = vmatprep.subr.mxu0 0.0
  %v523 = vand.u32 %v190, 4294901760
  %v524 = vsub.f32 %v190, %v523
  %v525 = vand.u32 %v524, 4294901760
  %v526 = vsub.f32 %v524, %v525
  %v527 = vand.u32 %v526, 4294901760
  %528 = vmatpush1.xpose.msra.mxu0 %v527
  %529 = vmatprep.subr.mxu0 0.0
  %v530 = vand.u32 %v193, 4294901760
  %v531 = vsub.f32 %v193, %v530
  %v532 = vand.u32 %v531, 4294901760
  %v533 = vsub.f32 %v531, %v532
  %v534 = vand.u32 %v533, 4294901760
  %535 = vmatpush1.xpose.msra.mxu0 %v534
  %536 = vmatprep.subr.mxu0 0.0
  %v537 = vand.u32 %v196, 4294901760
  %v538 = vsub.f32 %v196, %v537
  %v539 = vand.u32 %v538, 4294901760
  %v540 = vsub.f32 %v538, %v539
  %v541 = vand.u32 %v540, 4294901760
  %542 = vmatpush1.xpose.msra.mxu0 %v541
  %543 = vmatprep.subr.mxu0 0.0
  %v544 = vand.u32 %v199, 4294901760
  %v545 = vsub.f32 %v199, %v544
  %v546 = vand.u32 %v545, 4294901760
  %v547 = vsub.f32 %v545, %v546
  %v548 = vand.u32 %v547, 4294901760
  %549 = vmatpush1.xpose.msra.mxu0 %v548
  %550 = vmatprep.subr.mxu0 0.0
  %v551 = vand.u32 %v202, 4294901760
  %v552 = vsub.f32 %v202, %v551
  %v553 = vand.u32 %v552, 4294901760
  %v554 = vsub.f32 %v552, %v553
  %v555 = vand.u32 %v554, 4294901760
  %556 = vmatpush1.xpose.msra.mxu0 %v555
  %557 = vmatprep.subr.mxu0 0.0
  %558 = vmatpush1.xpose.msra.mxu0 0.0
  %559 = vmatprep.subr.mxu0 0.0
  %560 = vmatpush1.xpose.msra.mxu0 0.0
  %561 = vmatprep.subr.mxu0 0.0
  %562 = vmatpush1.xpose.msra.mxu0 0.0
  %563 = vmatprep.subr.mxu0 0.0
  %564 = vmatpush1.xpose.msra.mxu0 0.0
  %565 = vmatprep.subr.mxu0 0.0
  %566 = vmatpush1.xpose.msra.mxu0 0.0
  %567 = vmatprep.subr.mxu0 0.0
  %568 = vmatpush1.xpose.msra.mxu0 0.0
  %569 = vmatprep.subr.mxu0 0.0
  %570 = vmatpush1.xpose.msra.mxu0 0.0
  %571 = vmatprep.subr.mxu0 0.0
  %572 = vmatpush1.xpose.msra.mxu0 0.0
  %573 = vmatprep.subr.mxu0 0.0
  %574 = vmatpush1.xpose.msra.mxu0 0.0
  %575 = vmatprep.subr.mxu0 0.0
  %576 = vmatpush1.xpose.msra.mxu0 0.0
  %577 = vmatprep.subr.mxu0 0.0
  %578 = vmatpush1.xpose.msra.mxu0 0.0
  %579 = vmatprep.subr.mxu0 0.0
  %580 = vmatpush1.xpose.msra.mxu0 0.0
  %581 = vmatprep.subr.mxu0 0.0
  %582 = vmatpush1.xpose.msra.mxu0 0.0
  %583 = vmatprep.subr.mxu0 0.0
  %584 = vmatpush1.xpose.msra.mxu0 0.0
  %585 = vmatprep.subr.mxu0 0.0
  %586 = vmatpush1.xpose.msra.mxu0 0.0
  %587 = vmatprep.subr.mxu0 0.0
  %588 = vmatpush1.xpose.msra.mxu0 0.0
  %589 = vmatprep.mubr.f32.mxu0 0.0
  %v590 = vand.u32 %v109, 4294901760
  %591 = vmatmul.mubr.f32.gmra.mrb[0].mxu0 %v590
  %v592 = vpop.f32.mrb[0].mxu0
  %v593 = vadd.f32 %v292, %v592
  %v594 = vpop.f32.mrb[0].mxu0
  %595 = vmatprep.mubr.f32.mxu0 0.0
  %v596 = vand.u32 %v112, 4294901760
  %597 = vmatmul.mubr.f32.gmra.mrb[0].mxu0 %v596
  %v598 = vpop.f32.mrb[0].mxu0
  %v599 = vadd.f32 %v302, %v598
  %v600 = vpop.f32.mrb[0].mxu0
  %601 = vmatprep.mubr.f32.mxu0 0.0
  %v602 = vand.u32 %v115, 4294901760
  %603 = vmatmul.mubr.f32.gmra.mrb[0].mxu0 %v602
  %v604 = vpop.f32.mrb[0].mxu0
  %v605 = vadd.f32 %v312, %v604
  %v606 = vpop.f32.mrb[0].mxu0
  %607 = vmatprep.mubr.f32.mxu0 0.0
  %v608 = vand.u32 %v118, 4294901760
  %609 = vmatmul.mubr.f32.gmra.mrb[0].mxu0 %v608
  %v610 = vpop.f32.mrb[0].mxu0
  %v611 = vadd.f32 %v322, %v610
  %v612 = vpop.f32.mrb[0].mxu0
  %613 = vmatprep.mubr.f32.mxu0 0.0
  %v614 = vand.u32 %v121, 4294901760
  %615 = vmatmul.mubr.f32.gmra.mrb[0].mxu0 %v614
  %v616 = vpop.f32.mrb[0].mxu0
  %v617 = vadd.f32 %v332, %v616
  %v618 = vpop.f32.mrb[0].mxu0
  %619 = vmatprep.mubr.f32.mxu0 0.0
  %v620 = vand.u32 %v124, 4294901760
  %621 = vmatmul.mubr.f32.gmra.mrb[0].mxu0 %v620
  %v622 = vpop.f32.mrb[0].mxu0
  %v623 = vadd.f32 %v342, %v622
  %v624 = vpop.f32.mrb[0].mxu0
  %625 = vmatprep.mubr.f32.mxu0 0.0
  %v626 = vand.u32 %v127, 4294901760
  %627 = vmatmul.mubr.f32.gmra.mrb[0].mxu0 %v626
  %v628 = vpop.f32.mrb[0].mxu0
  %v629 = vadd.f32 %v352, %v628
  %v630 = vpop.f32.mrb[0].mxu0
  %631 = vmatprep.mubr.f32.mxu0 0.0
  %v632 = vand.u32 %v130, 4294901760
  %633 = vmatmul.mubr.f32.gmra.mrb[0].mxu0 %v632
  %v634 = vpop.f32.mrb[0].mxu0
  %v635 = vadd.f32 %v362, %v634
  %v636 = vpop.f32.mrb[0].mxu0
  %637 = vmatprep.mubr.f32.mxu0 0.0
  %v638 = vand.u32 %v133, 4294901760
  %639 = vmatmul.mubr.f32.gmra.mrb[0].mxu0 %v638
  %v640 = vpop.f32.mrb[0].mxu0
  %v641 = vadd.f32 %v372, %v640
  %v642 = vpop.f32.mrb[0].mxu0
  %643 = vmatprep.mubr.f32.mxu0 0.0
  %v644 = vand.u32 %v136, 4294901760
  %645 = vmatmul.mubr.f32.gmra.mrb[0].mxu0 %v644
  %v646 = vpop.f32.mrb[0].mxu0
  %v647 = vadd.f32 %v382, %v646
  %v648 = vpop.f32.mrb[0].mxu0
  %649 = vmatprep.mubr.f32.mxu0 0.0
  %v650 = vand.u32 %v139, 4294901760
  %651 = vmatmul.mubr.f32.gmra.mrb[0].mxu0 %v650
  %v652 = vpop.f32.mrb[0].mxu0
  %v653 = vadd.f32 %v392, %v652
  %v654 = vpop.f32.mrb[0].mxu0
  %655 = vmatprep.mubr.f32.mxu0 0.0
  %v656 = vand.u32 %v142, 4294901760
  %657 = vmatmul.mubr.f32.gmra.mrb[0].mxu0 %v656
  %v658 = vpop.f32.mrb[0].mxu0
  %v659 = vadd.f32 %v402, %v658
  %v660 = vpop.f32.mrb[0].mxu0
  %661 = vmatprep.mubr.f32.mxu0 0.0
  %v662 = vand.u32 %v145, 4294901760
  %663 = vmatmul.mubr.f32.gmra.mrb[0].mxu0 %v662
  %v664 = vpop.f32.mrb[0].mxu0
  %v665 = vadd.f32 %v412, %v664
  %v666 = vpop.f32.mrb[0].mxu0
  %667 = vmatprep.mubr.f32.mxu0 0.0
  %v668 = vand.u32 %v148, 4294901760
  %669 = vmatmul.mubr.f32.gmra.mrb[0].mxu0 %v668
  %v670 = vpop.f32.mrb[0].mxu0
  %v671 = vadd.f32 %v422, %v670
  %v672 = vpop.f32.mrb[0].mxu0
  %673 = vmatprep.mubr.f32.mxu0 0.0
  %v674 = vand.u32 %v151, 4294901760
  %675 = vmatmul.mubr.f32.gmra.mrb[0].mxu0 %v674
  %v676 = vpop.f32.mrb[0].mxu0
  %v677 = vadd.f32 %v432, %v676
  %v678 = vpop.f32.mrb[0].mxu0
  %679 = vmatprep.mubr.f32.mxu0 0.0
  %v680 = vand.u32 %v154, 4294901760
  %681 = vmatmul.mubr.f32.gmra.mrb[0].mxu0 %v680
  %v682 = vpop.f32.mrb[0].mxu0
  %v683 = vadd.f32 %v442, %v682
  %v684 = vpop.f32.mrb[0].mxu0
  %685 = vdwg.mxu0
  %686 = vmatprep.subr.mxu0 0.0
  %v687 = vand.u32 %v157, 4294901760
  %v688 = vsub.f32 %v157, %v687
  %689 = vmatpush1.xpose.msra.mxu0 %v688
  %690 = vmatprep.subr.mxu0 0.0
  %v691 = vand.u32 %v160, 4294901760
  %v692 = vsub.f32 %v160, %v691
  %693 = vmatpush1.xpose.msra.mxu0 %v692
  %694 = vmatprep.subr.mxu0 0.0
  %v695 = vand.u32 %v163, 4294901760
  %v696 = vsub.f32 %v163, %v695
  %697 = vmatpush1.xpose.msra.mxu0 %v696
  %698 = vmatprep.subr.mxu0 0.0
  %v699 = vand.u32 %v166, 4294901760
  %v700 = vsub.f32 %v166, %v699
  %701 = vmatpush1.xpose.msra.mxu0 %v700
  %702 = vmatprep.subr.mxu0 0.0
  %v703 = vand.u32 %v169, 4294901760
  %v704 = vsub.f32 %v169, %v703
  %705 = vmatpush1.xpose.msra.mxu0 %v704
  %706 = vmatprep.subr.mxu0 0.0
  %v707 = vand.u32 %v172, 4294901760
  %v708 = vsub.f32 %v172, %v707
  %709 = vmatpush1.xpose.msra.mxu0 %v708
  %710 = vmatprep.subr.mxu0 0.0
  %v711 = vand.u32 %v175, 4294901760
  %v712 = vsub.f32 %v175, %v711
  %713 = vmatpush1.xpose.msra.mxu0 %v712
  %714 = vmatprep.subr.mxu0 0.0
  %v715 = vand.u32 %v178, 4294901760
  %v716 = vsub.f32 %v178, %v715
  %717 = vmatpush1.xpose.msra.mxu0 %v716
  %718 = vmatprep.subr.mxu0 0.0
  %v719 = vand.u32 %v181, 4294901760
  %v720 = vsub.f32 %v181, %v719
  %721 = vmatpush1.xpose.msra.mxu0 %v720
  %722 = vmatprep.subr.mxu0 0.0
  %v723 = vand.u32 %v184, 4294901760
  %v724 = vsub.f32 %v184, %v723
  %725 = vmatpush1.xpose.msra.mxu0 %v724
  %726 = vmatprep.subr.mxu0 0.0
  %v727 = vand.u32 %v187, 4294901760
  %v728 = vsub.f32 %v187, %v727
  %729 = vmatpush1.xpose.msra.mxu0 %v728
  %730 = vmatprep.subr.mxu0 0.0
  %v731 = vand.u32 %v190, 4294901760
  %v732 = vsub.f32 %v190, %v731
  %733 = vmatpush1.xpose.msra.mxu0 %v732
  %734 = vmatprep.subr.mxu0 0.0
  %v735 = vand.u32 %v193, 4294901760
  %v736 = vsub.f32 %v193, %v735
  %737 = vmatpush1.xpose.msra.mxu0 %v736
  %738 = vmatprep.subr.mxu0 0.0
  %v739 = vand.u32 %v196, 4294901760
  %v740 = vsub.f32 %v196, %v739
  %741 = vmatpush1.xpose.msra.mxu0 %v740
  %742 = vmatprep.subr.mxu0 0.0
  %v743 = vand.u32 %v199, 4294901760
  %v744 = vsub.f32 %v199, %v743
  %745 = vmatpush1.xpose.msra.mxu0 %v744
  %746 = vmatprep.subr.mxu0 0.0
  %v747 = vand.u32 %v202, 4294901760
  %v748 = vsub.f32 %v202, %v747
  %749 = vmatpush1.xpose.msra.mxu0 %v748
  %750 = vmatprep.subr.mxu0 0.0
  %751 = vmatpush1.xpose.msra.mxu0 0.0
  %752 = vmatprep.subr.mxu0 0.0
  %753 = vmatpush1.xpose.msra.mxu0 0.0
  %754 = vmatprep.subr.mxu0 0.0
  %755 = vmatpush1.xpose.msra.mxu0 0.0
  %756 = vmatprep.subr.mxu0 0.0
  %757 = vmatpush1.xpose.msra.mxu0 0.0
  %758 = vmatprep.subr.mxu0 0.0
  %759 = vmatpush1.xpose.msra.mxu0 0.0
  %760 = vmatprep.subr.mxu0 0.0
  %761 = vmatpush1.xpose.msra.mxu0 0.0
  %762 = vmatprep.subr.mxu0 0.0
  %763 = vmatpush1.xpose.msra.mxu0 0.0
  %764 = vmatprep.subr.mxu0 0.0
  %765 = vmatpush1.xpose.msra.mxu0 0.0
  %766 = vmatprep.subr.mxu0 0.0
  %767 = vmatpush1.xpose.msra.mxu0 0.0
  %768 = vmatprep.subr.mxu0 0.0
  %769 = vmatpush1.xpose.msra.mxu0 0.0
  %770 = vmatprep.subr.mxu0 0.0
  %771 = vmatpush1.xpose.msra.mxu0 0.0
  %772 = vmatprep.subr.mxu0 0.0
  %773 = vmatpush1.xpose.msra.mxu0 0.0
  %774 = vmatprep.subr.mxu0 0.0
  %775 = vmatpush1.xpose.msra.mxu0 0.0
  %776 = vmatprep.subr.mxu0 0.0
  %777 = vmatpush1.xpose.msra.mxu0 0.0
  %778 = vmatprep.subr.mxu0 0.0
  %779 = vmatpush1.xpose.msra.mxu0 0.0
  %780 = vmatprep.subr.mxu0 0.0
  %781 = vmatpush1.xpose.msra.mxu0 0.0
  %782 = vmatprep.mubr.f32.mxu0 0.0
  %v783 = vand.u32 %v109, 4294901760
  %v784 = vsub.f32 %v109, %v783
  %785 = vmatmul.mubr.f32.gmra.mrb[0].mxu0 %v784
  %v786 = vpop.f32.mrb[0].mxu0
  %v787 = vadd.f32 %v593, %v786
  %v788 = vpop.f32.mrb[0].mxu0
  %789 = vmatprep.mubr.f32.mxu0 0.0
  %v790 = vand.u32 %v112, 4294901760
  %v791 = vsub.f32 %v112, %v790
  %792 = vmatmul.mubr.f32.gmra.mrb[0].mxu0 %v791
  %v793 = vpop.f32.mrb[0].mxu0
  %v794 = vadd.f32 %v599, %v793
  %v795 = vpop.f32.mrb[0].mxu0
  %796 = vmatprep.mubr.f32.mxu0 0.0
  %v797 = vand.u32 %v115, 4294901760
  %v798 = vsub.f32 %v115, %v797
  %799 = vmatmul.mubr.f32.gmra.mrb[0].mxu0 %v798
  %v800 = vpop.f32.mrb[0].mxu0
  %v801 = vadd.f32 %v605, %v800
  %v802 = vpop.f32.mrb[0].mxu0
  %803 = vmatprep.mubr.f32.mxu0 0.0
  %v804 = vand.u32 %v118, 4294901760
  %v805 = vsub.f32 %v118, %v804
  %806 = vmatmul.mubr.f32.gmra.mrb[0].mxu0 %v805
  %v807 = vpop.f32.mrb[0].mxu0
  %v808 = vadd.f32 %v611, %v807
  %v809 = vpop.f32.mrb[0].mxu0
  %810 = vmatprep.mubr.f32.mxu0 0.0
  %v811 = vand.u32 %v121, 4294901760
  %v812 = vsub.f32 %v121, %v811
  %813 = vmatmul.mubr.f32.gmra.mrb[0].mxu0 %v812
  %v814 = vpop.f32.mrb[0].mxu0
  %v815 = vadd.f32 %v617, %v814
  %v816 = vpop.f32.mrb[0].mxu0
  %817 = vmatprep.mubr.f32.mxu0 0.0
  %v818 = vand.u32 %v124, 4294901760
  %v819 = vsub.f32 %v124, %v818
  %820 = vmatmul.mubr.f32.gmra.mrb[0].mxu0 %v819
  %v821 = vpop.f32.mrb[0].mxu0
  %v822 = vadd.f32 %v623, %v821
  %v823 = vpop.f32.mrb[0].mxu0
  %824 = vmatprep.mubr.f32.mxu0 0.0
  %v825 = vand.u32 %v127, 4294901760
  %v826 = vsub.f32 %v127, %v825
  %827 = vmatmul.mubr.f32.gmra.mrb[0].mxu0 %v826
  %v828 = vpop.f32.mrb[0].mxu0
  %v829 = vadd.f32 %v629, %v828
  %v830 = vpop.f32.mrb[0].mxu0
  %831 = vmatprep.mubr.f32.mxu0 0.0
  %v832 = vand.u32 %v130, 4294901760
  %v833 = vsub.f32 %v130, %v832
  %834 = vmatmul.mubr.f32.gmra.mrb[0].mxu0 %v833
  %v835 = vpop.f32.mrb[0].mxu0
  %v836 = vadd.f32 %v635, %v835
  %v837 = vpop.f32.mrb[0].mxu0
  %838 = vmatprep.mubr.f32.mxu0 0.0
  %v839 = vand.u32 %v133, 4294901760
  %v840 = vsub.f32 %v133, %v839
  %841 = vmatmul.mubr.f32.gmra.mrb[0].mxu0 %v840
  %v842 = vpop.f32.mrb[0].mxu0
  %v843 = vadd.f32 %v641, %v842
  %v844 = vpop.f32.mrb[0].mxu0
  %845 = vmatprep.mubr.f32.mxu0 0.0
  %v846 = vand.u32 %v136, 4294901760
  %v847 = vsub.f32 %v136, %v846
  %848 = vmatmul.mubr.f32.gmra.mrb[0].mxu0 %v847
  %v849 = vpop.f32.mrb[0].mxu0
  %v850 = vadd.f32 %v647, %v849
  %v851 = vpop.f32.mrb[0].mxu0
  %852 = vmatprep.mubr.f32.mxu0 0.0
  %v853 = vand.u32 %v139, 4294901760
  %v854 = vsub.f32 %v139, %v853
  %855 = vmatmul.mubr.f32.gmra.mrb[0].mxu0 %v854
  %v856 = vpop.f32.mrb[0].mxu0
  %v857 = vadd.f32 %v653, %v856
  %v858 = vpop.f32.mrb[0].mxu0
  %859 = vmatprep.mubr.f32.mxu0 0.0
  %v860 = vand.u32 %v142, 4294901760
  %v861 = vsub.f32 %v142, %v860
  %862 = vmatmul.mubr.f32.gmra.mrb[0].mxu0 %v861
  %v863 = vpop.f32.mrb[0].mxu0
  %v864 = vadd.f32 %v659, %v863
  %v865 = vpop.f32.mrb[0].mxu0
  %866 = vmatprep.mubr.f32.mxu0 0.0
  %v867 = vand.u32 %v145, 4294901760
  %v868 = vsub.f32 %v145, %v867
  %869 = vmatmul.mubr.f32.gmra.mrb[0].mxu0 %v868
  %v870 = vpop.f32.mrb[0].mxu0
  %v871 = vadd.f32 %v665, %v870
  %v872 = vpop.f32.mrb[0].mxu0
  %873 = vmatprep.mubr.f32.mxu0 0.0
  %v874 = vand.u32 %v148, 4294901760
  %v875 = vsub.f32 %v148, %v874
  %876 = vmatmul.mubr.f32.gmra.mrb[0].mxu0 %v875
  %v877 = vpop.f32.mrb[0].mxu0
  %v878 = vadd.f32 %v671, %v877
  %v879 = vpop.f32.mrb[0].mxu0
  %880 = vmatprep.mubr.f32.mxu0 0.0
  %v881 = vand.u32 %v151, 4294901760
  %v882 = vsub.f32 %v151, %v881
  %883 = vmatmul.mubr.f32.gmra.mrb[0].mxu0 %v882
  %v884 = vpop.f32.mrb[0].mxu0
  %v885 = vadd.f32 %v677, %v884
  %v886 = vpop.f32.mrb[0].mxu0
  %887 = vmatprep.mubr.f32.mxu0 0.0
  %v888 = vand.u32 %v154, 4294901760
  %v889 = vsub.f32 %v154, %v888
  %890 = vmatmul.mubr.f32.gmra.mrb[0].mxu0 %v889
  %v891 = vpop.f32.mrb[0].mxu0
  %v892 = vadd.f32 %v683, %v891
  %v893 = vpop.f32.mrb[0].mxu0
  %894 = vdwg.mxu0
  %895 = vmatprep.subr.mxu0 0.0
  %v896 = vand.u32 %v157, 4294901760
  %897 = vmatpush1.xpose.msra.mxu0 %v896
  %898 = vmatprep.subr.mxu0 0.0
  %v899 = vand.u32 %v160, 4294901760
  %900 = vmatpush1.xpose.msra.mxu0 %v899
  %901 = vmatprep.subr.mxu0 0.0
  %v902 = vand.u32 %v163, 4294901760
  %903 = vmatpush1.xpose.msra.mxu0 %v902
  %904 = vmatprep.subr.mxu0 0.0
  %v905 = vand.u32 %v166, 4294901760
  %906 = vmatpush1.xpose.msra.mxu0 %v905
  %907 = vmatprep.subr.mxu0 0.0
  %v908 = vand.u32 %v169, 4294901760
  %909 = vmatpush1.xpose.msra.mxu0 %v908
  %910 = vmatprep.subr.mxu0 0.0
  %v911 = vand.u32 %v172, 4294901760
  %912 = vmatpush1.xpose.msra.mxu0 %v911
  %913 = vmatprep.subr.mxu0 0.0
  %v914 = vand.u32 %v175, 4294901760
  %915 = vmatpush1.xpose.msra.mxu0 %v914
  %916 = vmatprep.subr.mxu0 0.0
  %v917 = vand.u32 %v178, 4294901760
  %918 = vmatpush1.xpose.msra.mxu0 %v917
  %919 = vmatprep.subr.mxu0 0.0
  %v920 = vand.u32 %v181, 4294901760
  %921 = vmatpush1.xpose.msra.mxu0 %v920
  %922 = vmatprep.subr.mxu0 0.0
  %v923 = vand.u32 %v184, 4294901760
  %924 = vmatpush1.xpose.msra.mxu0 %v923
  %925 = vmatprep.subr.mxu0 0.0
  %v926 = vand.u32 %v187, 4294901760
  %927 = vmatpush1.xpose.msra.mxu0 %v926
  %928 = vmatprep.subr.mxu0 0.0
  %v929 = vand.u32 %v190, 4294901760
  %930 = vmatpush1.xpose.msra.mxu0 %v929
  %931 = vmatprep.subr.mxu0 0.0
  %v932 = vand.u32 %v193, 4294901760
  %933 = vmatpush1.xpose.msra.mxu0 %v932
  %934 = vmatprep.subr.mxu0 0.0
  %v935 = vand.u32 %v196, 4294901760
  %936 = vmatpush1.xpose.msra.mxu0 %v935
  %937 = vmatprep.subr.mxu0 0.0
  %v938 = vand.u32 %v199, 4294901760
  %939 = vmatpush1.xpose.msra.mxu0 %v938
  %940 = vmatprep.subr.mxu0 0.0
  %v941 = vand.u32 %v202, 4294901760
  %942 = vmatpush1.xpose.msra.mxu0 %v941
  %943 = vmatprep.subr.mxu0 0.0
  %944 = vmatpush1.xpose.msra.mxu0 0.0
  %945 = vmatprep.subr.mxu0 0.0
  %946 = vmatpush1.xpose.msra.mxu0 0.0
  %947 = vmatprep.subr.mxu0 0.0
  %948 = vmatpush1.xpose.msra.mxu0 0.0
  %949 = vmatprep.subr.mxu0 0.0
  %950 = vmatpush1.xpose.msra.mxu0 0.0
  %951 = vmatprep.subr.mxu0 0.0
  %952 = vmatpush1.xpose.msra.mxu0 0.0
  %953 = vmatprep.subr.mxu0 0.0
  %954 = vmatpush1.xpose.msra.mxu0 0.0
  %955 = vmatprep.subr.mxu0 0.0
  %956 = vmatpush1.xpose.msra.mxu0 0.0
  %957 = vmatprep.subr.mxu0 0.0
  %958 = vmatpush1.xpose.msra.mxu0 0.0
  %959 = vmatprep.subr.mxu0 0.0
  %960 = vmatpush1.xpose.msra.mxu0 0.0
  %961 = vmatprep.subr.mxu0 0.0
  %962 = vmatpush1.xpose.msra.mxu0 0.0
  %963 = vmatprep.subr.mxu0 0.0
  %964 = vmatpush1.xpose.msra.mxu0 0.0
  %965 = vmatprep.subr.mxu0 0.0
  %966 = vmatpush1.xpose.msra.mxu0 0.0
  %967 = vmatprep.subr.mxu0 0.0
  %968 = vmatpush1.xpose.msra.mxu0 0.0
  %969 = vmatprep.subr.mxu0 0.0
  %970 = vmatpush1.xpose.msra.mxu0 0.0
  %971 = vmatprep.subr.mxu0 0.0
  %972 = vmatpush1.xpose.msra.mxu0 0.0
  %973 = vmatprep.subr.mxu0 0.0
  %974 = vmatpush1.xpose.msra.mxu0 0.0
  %975 = vmatprep.mubr.f32.mxu0 0.0
  %v976 = vand.u32 %v109, 4294901760
  %v977 = vsub.f32 %v109, %v976
  %v978 = vand.u32 %v977, 4294901760
  %979 = vmatmul.mubr.f32.gmra.mrb[0].mxu0 %v978
  %v980 = vpop.f32.mrb[0].mxu0
  %v981 = vadd.f32 %v787, %v980
  %v982 = vpop.f32.mrb[0].mxu0
  %983 = vmatprep.mubr.f32.mxu0 0.0
  %v984 = vand.u32 %v112, 4294901760
  %v985 = vsub.f32 %v112, %v984
  %v986 = vand.u32 %v985, 4294901760
  %987 = vmatmul.mubr.f32.gmra.mrb[0].mxu0 %v986
  %v988 = vpop.f32.mrb[0].mxu0
  %v989 = vadd.f32 %v794, %v988
  %v990 = vpop.f32.mrb[0].mxu0
  %991 = vmatprep.mubr.f32.mxu0 0.0
  %v992 = vand.u32 %v115, 4294901760
  %v993 = vsub.f32 %v115, %v992
  %v994 = vand.u32 %v993, 4294901760
  %995 = vmatmul.mubr.f32.gmra.mrb[0].mxu0 %v994
  %v996 = vpop.f32.mrb[0].mxu0
  %v997 = vadd.f32 %v801, %v996
  %v998 = vpop.f32.mrb[0].mxu0
  %999 = vmatprep.mubr.f32.mxu0 0.0
  %v1000 = vand.u32 %v118, 4294901760
  %v1001 = vsub.f32 %v118, %v1000
  %v1002 = vand.u32 %v1001, 4294901760
  %1003 = vmatmul.mubr.f32.gmra.mrb[0].mxu0 %v1002
  %v1004 = vpop.f32.mrb[0].mxu0
  %v1005 = vadd.f32 %v808, %v1004
  %v1006 = vpop.f32.mrb[0].mxu0
  %1007 = vmatprep.mubr.f32.mxu0 0.0
  %v1008 = vand.u32 %v121, 4294901760
  %v1009 = vsub.f32 %v121, %v1008
  %v1010 = vand.u32 %v1009, 4294901760
  %1011 = vmatmul.mubr.f32.gmra.mrb[0].mxu0 %v1010
  %v1012 = vpop.f32.mrb[0].mxu0
  %v1013 = vadd.f32 %v815, %v1012
  %v1014 = vpop.f32.mrb[0].mxu0
  %1015 = vmatprep.mubr.f32.mxu0 0.0
  %v1016 = vand.u32 %v124, 4294901760
  %v1017 = vsub.f32 %v124, %v1016
  %v1018 = vand.u32 %v1017, 4294901760
  %1019 = vmatmul.mubr.f32.gmra.mrb[0].mxu0 %v1018
  %v1020 = vpop.f32.mrb[0].mxu0
  %v1021 = vadd.f32 %v822, %v1020
  %v1022 = vpop.f32.mrb[0].mxu0
  %1023 = vmatprep.mubr.f32.mxu0 0.0
  %v1024 = vand.u32 %v127, 4294901760
  %v1025 = vsub.f32 %v127, %v1024
  %v1026 = vand.u32 %v1025, 4294901760
  %1027 = vmatmul.mubr.f32.gmra.mrb[0].mxu0 %v1026
  %v1028 = vpop.f32.mrb[0].mxu0
  %v1029 = vadd.f32 %v829, %v1028
  %v1030 = vpop.f32.mrb[0].mxu0
  %1031 = vmatprep.mubr.f32.mxu0 0.0
  %v1032 = vand.u32 %v130, 4294901760
  %v1033 = vsub.f32 %v130, %v1032
  %v1034 = vand.u32 %v1033, 4294901760
  %1035 = vmatmul.mubr.f32.gmra.mrb[0].mxu0 %v1034
  %v1036 = vpop.f32.mrb[0].mxu0
  %v1037 = vadd.f32 %v836, %v1036
  %v1038 = vpop.f32.mrb[0].mxu0
  %1039 = vmatprep.mubr.f32.mxu0 0.0
  %v1040 = vand.u32 %v133, 4294901760
  %v1041 = vsub.f32 %v133, %v1040
  %v1042 = vand.u32 %v1041, 4294901760
  %1043 = vmatmul.mubr.f32.gmra.mrb[0].mxu0 %v1042
  %v1044 = vpop.f32.mrb[0].mxu0
  %v1045 = vadd.f32 %v843, %v1044
  %v1046 = vpop.f32.mrb[0].mxu0
  %1047 = vmatprep.mubr.f32.mxu0 0.0
  %v1048 = vand.u32 %v136, 4294901760
  %v1049 = vsub.f32 %v136, %v1048
  %v1050 = vand.u32 %v1049, 4294901760
  %1051 = vmatmul.mubr.f32.gmra.mrb[0].mxu0 %v1050
  %v1052 = vpop.f32.mrb[0].mxu0
  %v1053 = vadd.f32 %v850, %v1052
  %v1054 = vpop.f32.mrb[0].mxu0
  %1055 = vmatprep.mubr.f32.mxu0 0.0
  %v1056 = vand.u32 %v139, 4294901760
  %v1057 = vsub.f32 %v139, %v1056
  %v1058 = vand.u32 %v1057, 4294901760
  %1059 = vmatmul.mubr.f32.gmra.mrb[0].mxu0 %v1058
  %v1060 = vpop.f32.mrb[0].mxu0
  %v1061 = vadd.f32 %v857, %v1060
  %v1062 = vpop.f32.mrb[0].mxu0
  %1063 = vmatprep.mubr.f32.mxu0 0.0
  %v1064 = vand.u32 %v142, 4294901760
  %v1065 = vsub.f32 %v142, %v1064
  %v1066 = vand.u32 %v1065, 4294901760
  %1067 = vmatmul.mubr.f32.gmra.mrb[0].mxu0 %v1066
  %v1068 = vpop.f32.mrb[0].mxu0
  %v1069 = vadd.f32 %v864, %v1068
  %v1070 = vpop.f32.mrb[0].mxu0
  %1071 = vmatprep.mubr.f32.mxu0 0.0
  %v1072 = vand.u32 %v145, 4294901760
  %v1073 = vsub.f32 %v145, %v1072
  %v1074 = vand.u32 %v1073, 4294901760
  %1075 = vmatmul.mubr.f32.gmra.mrb[0].mxu0 %v1074
  %v1076 = vpop.f32.mrb[0].mxu0
  %v1077 = vadd.f32 %v871, %v1076
  %v1078 = vpop.f32.mrb[0].mxu0
  %1079 = vmatprep.mubr.f32.mxu0 0.0
  %v1080 = vand.u32 %v148, 4294901760
  %v1081 = vsub.f32 %v148, %v1080
  %v1082 = vand.u32 %v1081, 4294901760
  %1083 = vmatmul.mubr.f32.gmra.mrb[0].mxu0 %v1082
  %v1084 = vpop.f32.mrb[0].mxu0
  %v1085 = vadd.f32 %v878, %v1084
  %v1086 = vpop.f32.mrb[0].mxu0
  %1087 = vmatprep.mubr.f32.mxu0 0.0
  %v1088 = vand.u32 %v151, 4294901760
  %v1089 = vsub.f32 %v151, %v1088
  %v1090 = vand.u32 %v1089, 4294901760
  %1091 = vmatmul.mubr.f32.gmra.mrb[0].mxu0 %v1090
  %v1092 = vpop.f32.mrb[0].mxu0
  %v1093 = vadd.f32 %v885, %v1092
  %v1094 = vpop.f32.mrb[0].mxu0
  %1095 = vmatprep.mubr.f32.mxu0 0.0
  %v1096 = vand.u32 %v154, 4294901760
  %v1097 = vsub.f32 %v154, %v1096
  %v1098 = vand.u32 %v1097, 4294901760
  %1099 = vmatmul.mubr.f32.gmra.mrb[0].mxu0 %v1098
  %v1100 = vpop.f32.mrb[0].mxu0
  %v1101 = vadd.f32 %v892, %v1100
  %v1102 = vpop.f32.mrb[0].mxu0
  %1103 = vdwg.mxu0
  %1104 = vmatprep.subr.mxu0 0.0
  %v1105 = vand.u32 %v157, 4294901760
  %v1106 = vsub.f32 %v157, %v1105
  %v1107 = vand.u32 %v1106, 4294901760
  %1108 = vmatpush1.xpose.msra.mxu0 %v1107
  %1109 = vmatprep.subr.mxu0 0.0
  %v1110 = vand.u32 %v160, 4294901760
  %v1111 = vsub.f32 %v160, %v1110
  %v1112 = vand.u32 %v1111, 4294901760
  %1113 = vmatpush1.xpose.msra.mxu0 %v1112
  %1114 = vmatprep.subr.mxu0 0.0
  %v1115 = vand.u32 %v163, 4294901760
  %v1116 = vsub.f32 %v163, %v1115
  %v1117 = vand.u32 %v1116, 4294901760
  %1118 = vmatpush1.xpose.msra.mxu0 %v1117
  %1119 = vmatprep.subr.mxu0 0.0
  %v1120 = vand.u32 %v166, 4294901760
  %v1121 = vsub.f32 %v166, %v1120
  %v1122 = vand.u32 %v1121, 4294901760
  %1123 = vmatpush1.xpose.msra.mxu0 %v1122
  %1124 = vmatprep.subr.mxu0 0.0
  %v1125 = vand.u32 %v169, 4294901760
  %v1126 = vsub.f32 %v169, %v1125
  %v1127 = vand.u32 %v1126, 4294901760
  %1128 = vmatpush1.xpose.msra.mxu0 %v1127
  %1129 = vmatprep.subr.mxu0 0.0
  %v1130 = vand.u32 %v172, 4294901760
  %v1131 = vsub.f32 %v172, %v1130
  %v1132 = vand.u32 %v1131, 4294901760
  %1133 = vmatpush1.xpose.msra.mxu0 %v1132
  %1134 = vmatprep.subr.mxu0 0.0
  %v1135 = vand.u32 %v175, 4294901760
  %v1136 = vsub.f32 %v175, %v1135
  %v1137 = vand.u32 %v1136, 4294901760
  %1138 = vmatpush1.xpose.msra.mxu0 %v1137
  %1139 = vmatprep.subr.mxu0 0.0
  %v1140 = vand.u32 %v178, 4294901760
  %v1141 = vsub.f32 %v178, %v1140
  %v1142 = vand.u32 %v1141, 4294901760
  %1143 = vmatpush1.xpose.msra.mxu0 %v1142
  %1144 = vmatprep.subr.mxu0 0.0
  %v1145 = vand.u32 %v181, 4294901760
  %v1146 = vsub.f32 %v181, %v1145
  %v1147 = vand.u32 %v1146, 4294901760
  %1148 = vmatpush1.xpose.msra.mxu0 %v1147
  %1149 = vmatprep.subr.mxu0 0.0
  %v1150 = vand.u32 %v184, 4294901760
  %v1151 = vsub.f32 %v184, %v1150
  %v1152 = vand.u32 %v1151, 4294901760
  %1153 = vmatpush1.xpose.msra.mxu0 %v1152
  %1154 = vmatprep.subr.mxu0 0.0
  %v1155 = vand.u32 %v187, 4294901760
  %v1156 = vsub.f32 %v187, %v1155
  %v1157 = vand.u32 %v1156, 4294901760
  %1158 = vmatpush1.xpose.msra.mxu0 %v1157
  %1159 = vmatprep.subr.mxu0 0.0
  %v1160 = vand.u32 %v190, 4294901760
  %v1161 = vsub.f32 %v190, %v1160
  %v1162 = vand.u32 %v1161, 4294901760
  %1163 = vmatpush1.xpose.msra.mxu0 %v1162
  %1164 = vmatprep.subr.mxu0 0.0
  %v1165 = vand.u32 %v193, 4294901760
  %v1166 = vsub.f32 %v193, %v1165
  %v1167 = vand.u32 %v1166, 4294901760
  %1168 = vmatpush1.xpose.msra.mxu0 %v1167
  %1169 = vmatprep.subr.mxu0 0.0
  %v1170 = vand.u32 %v196, 4294901760
  %v1171 = vsub.f32 %v196, %v1170
  %v1172 = vand.u32 %v1171, 4294901760
  %1173 = vmatpush1.xpose.msra.mxu0 %v1172
  %1174 = vmatprep.subr.mxu0 0.0
  %v1175 = vand.u32 %v199, 4294901760
  %v1176 = vsub.f32 %v199, %v1175
  %v1177 = vand.u32 %v1176, 4294901760
  %1178 = vmatpush1.xpose.msra.mxu0 %v1177
  %1179 = vmatprep.subr.mxu0 0.0
  %v1180 = vand.u32 %v202, 4294901760
  %v1181 = vsub.f32 %v202, %v1180
  %v1182 = vand.u32 %v1181, 4294901760
  %1183 = vmatpush1.xpose.msra.mxu0 %v1182
  %1184 = vmatprep.subr.mxu0 0.0
  %1185 = vmatpush1.xpose.msra.mxu0 0.0
  %1186 = vmatprep.subr.mxu0 0.0
  %1187 = vmatpush1.xpose.msra.mxu0 0.0
  %1188 = vmatprep.subr.mxu0 0.0
  %1189 = vmatpush1.xpose.msra.mxu0 0.0
  %1190 = vmatprep.subr.mxu0 0.0
  %1191 = vmatpush1.xpose.msra.mxu0 0.0
  %1192 = vmatprep.subr.mxu0 0.0
  %1193 = vmatpush1.xpose.msra.mxu0 0.0
  %1194 = vmatprep.subr.mxu0 0.0
  %1195 = vmatpush1.xpose.msra.mxu0 0.0
  %1196 = vmatprep.subr.mxu0 0.0
  %1197 = vmatpush1.xpose.msra.mxu0 0.0
  %1198 = vmatprep.subr.mxu0 0.0
  %1199 = vmatpush1.xpose.msra.mxu0 0.0
  %1200 = vmatprep.subr.mxu0 0.0
  %1201 = vmatpush1.xpose.msra.mxu0 0.0
  %1202 = vmatprep.subr.mxu0 0.0
  %1203 = vmatpush1.xpose.msra.mxu0 0.0
  %1204 = vmatprep.subr.mxu0 0.0
  %1205 = vmatpush1.xpose.msra.mxu0 0.0
  %1206 = vmatprep.subr.mxu0 0.0
  %1207 = vmatpush1.xpose.msra.mxu0 0.0
  %1208 = vmatprep.subr.mxu0 0.0
  %1209 = vmatpush1.xpose.msra.mxu0 0.0
  %1210 = vmatprep.subr.mxu0 0.0
  %1211 = vmatpush1.xpose.msra.mxu0 0.0
  %1212 = vmatprep.subr.mxu0 0.0
  %1213 = vmatpush1.xpose.msra.mxu0 0.0
  %1214 = vmatprep.subr.mxu0 0.0
  %1215 = vmatpush1.xpose.msra.mxu0 0.0
  %1216 = vmatprep.mubr.f32.mxu0 0.0
  %v1217 = vand.u32 %v109, 4294901760
  %1218 = vmatmul.mubr.f32.gmra.mrb[0].mxu0 %v1217
  %v1219 = vpop.f32.mrb[0].mxu0
  %v1220 = vadd.f32 %v981, %v1219
  %v1221 = vpop.f32.mrb[0].mxu0
  %1222 = vmatprep.mubr.f32.mxu0 0.0
  %v1223 = vand.u32 %v112, 4294901760
  %1224 = vmatmul.mubr.f32.gmra.mrb[0].mxu0 %v1223
  %v1225 = vpop.f32.mrb[0].mxu0
  %v1226 = vadd.f32 %v989, %v1225
  %v1227 = vpop.f32.mrb[0].mxu0
  %1228 = vmatprep.mubr.f32.mxu0 0.0
  %v1229 = vand.u32 %v115, 4294901760
  %1230 = vmatmul.mubr.f32.gmra.mrb[0].mxu0 %v1229
  %v1231 = vpop.f32.mrb[0].mxu0
  %v1232 = vadd.f32 %v997, %v1231
  %v1233 = vpop.f32.mrb[0].mxu0
  %1234 = vmatprep.mubr.f32.mxu0 0.0
  %v1235 = vand.u32 %v118, 4294901760
  %1236 = vmatmul.mubr.f32.gmra.mrb[0].mxu0 %v1235
  %v1237 = vpop.f32.mrb[0].mxu0
  %v1238 = vadd.f32 %v1005, %v1237
  %v1239 = vpop.f32.mrb[0].mxu0
  %1240 = vmatprep.mubr.f32.mxu0 0.0
  %v1241 = vand.u32 %v121, 4294901760
  %1242 = vmatmul.mubr.f32.gmra.mrb[0].mxu0 %v1241
  %v1243 = vpop.f32.mrb[0].mxu0
  %v1244 = vadd.f32 %v1013, %v1243
  %v1245 = vpop.f32.mrb[0].mxu0
  %1246 = vmatprep.mubr.f32.mxu0 0.0
  %v1247 = vand.u32 %v124, 4294901760
  %1248 = vmatmul.mubr.f32.gmra.mrb[0].mxu0 %v1247
  %v1249 = vpop.f32.mrb[0].mxu0
  %v1250 = vadd.f32 %v1021, %v1249
  %v1251 = vpop.f32.mrb[0].mxu0
  %1252 = vmatprep.mubr.f32.mxu0 0.0
  %v1253 = vand.u32 %v127, 4294901760
  %1254 = vmatmul.mubr.f32.gmra.mrb[0].mxu0 %v1253
  %v1255 = vpop.f32.mrb[0].mxu0
  %v1256 = vadd.f32 %v1029, %v1255
  %v1257 = vpop.f32.mrb[0].mxu0
  %1258 = vmatprep.mubr.f32.mxu0 0.0
  %v1259 = vand.u32 %v130, 4294901760
  %1260 = vmatmul.mubr.f32.gmra.mrb[0].mxu0 %v1259
  %v1261 = vpop.f32.mrb[0].mxu0
  %v1262 = vadd.f32 %v1037, %v1261
  %v1263 = vpop.f32.mrb[0].mxu0
  %1264 = vmatprep.mubr.f32.mxu0 0.0
  %v1265 = vand.u32 %v133, 4294901760
  %1266 = vmatmul.mubr.f32.gmra.mrb[0].mxu0 %v1265
  %v1267 = vpop.f32.mrb[0].mxu0
  %v1268 = vadd.f32 %v1045, %v1267
  %v1269 = vpop.f32.mrb[0].mxu0
  %1270 = vmatprep.mubr.f32.mxu0 0.0
  %v1271 = vand.u32 %v136, 4294901760
  %1272 = vmatmul.mubr.f32.gmra.mrb[0].mxu0 %v1271
  %v1273 = vpop.f32.mrb[0].mxu0
  %v1274 = vadd.f32 %v1053, %v1273
  %v1275 = vpop.f32.mrb[0].mxu0
  %1276 = vmatprep.mubr.f32.mxu0 0.0
  %v1277 = vand.u32 %v139, 4294901760
  %1278 = vmatmul.mubr.f32.gmra.mrb[0].mxu0 %v1277
  %v1279 = vpop.f32.mrb[0].mxu0
  %v1280 = vadd.f32 %v1061, %v1279
  %v1281 = vpop.f32.mrb[0].mxu0
  %1282 = vmatprep.mubr.f32.mxu0 0.0
  %v1283 = vand.u32 %v142, 4294901760
  %1284 = vmatmul.mubr.f32.gmra.mrb[0].mxu0 %v1283
  %v1285 = vpop.f32.mrb[0].mxu0
  %v1286 = vadd.f32 %v1069, %v1285
  %v1287 = vpop.f32.mrb[0].mxu0
  %1288 = vmatprep.mubr.f32.mxu0 0.0
  %v1289 = vand.u32 %v145, 4294901760
  %1290 = vmatmul.mubr.f32.gmra.mrb[0].mxu0 %v1289
  %v1291 = vpop.f32.mrb[0].mxu0
  %v1292 = vadd.f32 %v1077, %v1291
  %v1293 = vpop.f32.mrb[0].mxu0
  %1294 = vmatprep.mubr.f32.mxu0 0.0
  %v1295 = vand.u32 %v148, 4294901760
  %1296 = vmatmul.mubr.f32.gmra.mrb[0].mxu0 %v1295
  %v1297 = vpop.f32.mrb[0].mxu0
  %v1298 = vadd.f32 %v1085, %v1297
  %v1299 = vpop.f32.mrb[0].mxu0
  %1300 = vmatprep.mubr.f32.mxu0 0.0
  %v1301 = vand.u32 %v151, 4294901760
  %1302 = vmatmul.mubr.f32.gmra.mrb[0].mxu0 %v1301
  %v1303 = vpop.f32.mrb[0].mxu0
  %v1304 = vadd.f32 %v1093, %v1303
  %v1305 = vpop.f32.mrb[0].mxu0
  %1306 = vmatprep.mubr.f32.mxu0 0.0
  %v1307 = vand.u32 %v154, 4294901760
  %1308 = vmatmul.mubr.f32.gmra.mrb[0].mxu0 %v1307
  %v1309 = vpop.f32.mrb[0].mxu0
  %v1310 = vadd.f32 %v1101, %v1309
  %v1311 = vpop.f32.mrb[0].mxu0
  %1312 = vdwg.mxu0
  %1313 = vmatprep.subr.mxu0 0.0
  %v1314 = vand.u32 %v157, 4294901760
  %1315 = vmatpush1.xpose.msra.mxu0 %v1314
  %1316 = vmatprep.subr.mxu0 0.0
  %v1317 = vand.u32 %v160, 4294901760
  %1318 = vmatpush1.xpose.msra.mxu0 %v1317
  %1319 = vmatprep.subr.mxu0 0.0
  %v1320 = vand.u32 %v163, 4294901760
  %1321 = vmatpush1.xpose.msra.mxu0 %v1320
  %1322 = vmatprep.subr.mxu0 0.0
  %v1323 = vand.u32 %v166, 4294901760
  %1324 = vmatpush1.xpose.msra.mxu0 %v1323
  %1325 = vmatprep.subr.mxu0 0.0
  %v1326 = vand.u32 %v169, 4294901760
  %1327 = vmatpush1.xpose.msra.mxu0 %v1326
  %1328 = vmatprep.subr.mxu0 0.0
  %v1329 = vand.u32 %v172, 4294901760
  %1330 = vmatpush1.xpose.msra.mxu0 %v1329
  %1331 = vmatprep.subr.mxu0 0.0
  %v1332 = vand.u32 %v175, 4294901760
  %1333 = vmatpush1.xpose.msra.mxu0 %v1332
  %1334 = vmatprep.subr.mxu0 0.0
  %v1335 = vand.u32 %v178, 4294901760
  %1336 = vmatpush1.xpose.msra.mxu0 %v1335
  %1337 = vmatprep.subr.mxu0 0.0
  %v1338 = vand.u32 %v181, 4294901760
  %1339 = vmatpush1.xpose.msra.mxu0 %v1338
  %1340 = vmatprep.subr.mxu0 0.0
  %v1341 = vand.u32 %v184, 4294901760
  %1342 = vmatpush1.xpose.msra.mxu0 %v1341
  %1343 = vmatprep.subr.mxu0 0.0
  %v1344 = vand.u32 %v187, 4294901760
  %1345 = vmatpush1.xpose.msra.mxu0 %v1344
  %1346 = vmatprep.subr.mxu0 0.0
  %v1347 = vand.u32 %v190, 4294901760
  %1348 = vmatpush1.xpose.msra.mxu0 %v1347
  %1349 = vmatprep.subr.mxu0 0.0
  %v1350 = vand.u32 %v193, 4294901760
  %1351 = vmatpush1.xpose.msra.mxu0 %v1350
  %1352 = vmatprep.subr.mxu0 0.0
  %v1353 = vand.u32 %v196, 4294901760
  %1354 = vmatpush1.xpose.msra.mxu0 %v1353
  %1355 = vmatprep.subr.mxu0 0.0
  %v1356 = vand.u32 %v199, 4294901760
  %1357 = vmatpush1.xpose.msra.mxu0 %v1356
  %1358 = vmatprep.subr.mxu0 0.0
  %v1359 = vand.u32 %v202, 4294901760
  %1360 = vmatpush1.xpose.msra.mxu0 %v1359
  %1361 = vmatprep.subr.mxu0 0.0
  %1362 = vmatpush1.xpose.msra.mxu0 0.0
  %1363 = vmatprep.subr.mxu0 0.0
  %1364 = vmatpush1.xpose.msra.mxu0 0.0
  %1365 = vmatprep.subr.mxu0 0.0
  %1366 = vmatpush1.xpose.msra.mxu0 0.0
  %1367 = vmatprep.subr.mxu0 0.0
  %1368 = vmatpush1.xpose.msra.mxu0 0.0
  %1369 = vmatprep.subr.mxu0 0.0
  %1370 = vmatpush1.xpose.msra.mxu0 0.0
  %1371 = vmatprep.subr.mxu0 0.0
  %1372 = vmatpush1.xpose.msra.mxu0 0.0
  %1373 = vmatprep.subr.mxu0 0.0
  %1374 = vmatpush1.xpose.msra.mxu0 0.0
  %1375 = vmatprep.subr.mxu0 0.0
  %1376 = vmatpush1.xpose.msra.mxu0 0.0
  %1377 = vmatprep.subr.mxu0 0.0
  %1378 = vmatpush1.xpose.msra.mxu0 0.0
  %1379 = vmatprep.subr.mxu0 0.0
  %1380 = vmatpush1.xpose.msra.mxu0 0.0
  %1381 = vmatprep.subr.mxu0 0.0
  %1382 = vmatpush1.xpose.msra.mxu0 0.0
  %1383 = vmatprep.subr.mxu0 0.0
  %1384 = vmatpush1.xpose.msra.mxu0 0.0
  %1385 = vmatprep.subr.mxu0 0.0
  %1386 = vmatpush1.xpose.msra.mxu0 0.0
  %1387 = vmatprep.subr.mxu0 0.0
  %1388 = vmatpush1.xpose.msra.mxu0 0.0
  %1389 = vmatprep.subr.mxu0 0.0
  %1390 = vmatpush1.xpose.msra.mxu0 0.0
  %1391 = vmatprep.subr.mxu0 0.0
  %1392 = vmatpush1.xpose.msra.mxu0 0.0
  %1393 = vmatprep.mubr.f32.mxu0 0.0
  %v1394 = vand.u32 %v109, 4294901760
  %1395 = vmatmul.mubr.f32.gmra.mrb[0].mxu0 %v1394
  %v1396 = vpop.f32.mrb[0].mxu0
  %v1397 = vadd.f32 %v1220, %v1396
  %v1398 = vpop.f32.mrb[0].mxu0
  %1399 = vmatprep.mubr.f32.mxu0 0.0
  %v1400 = vand.u32 %v112, 4294901760
  %1401 = vmatmul.mubr.f32.gmra.mrb[0].mxu0 %v1400
  %v1402 = vpop.f32.mrb[0].mxu0
  %v1403 = vadd.f32 %v1226, %v1402
  %v1404 = vpop.f32.mrb[0].mxu0
  %1405 = vmatprep.mubr.f32.mxu0 0.0
  %v1406 = vand.u32 %v115, 4294901760
  %1407 = vmatmul.mubr.f32.gmra.mrb[0].mxu0 %v1406
  %v1408 = vpop.f32.mrb[0].mxu0
  %v1409 = vadd.f32 %v1232, %v1408
  %v1410 = vpop.f32.mrb[0].mxu0
  %1411 = vmatprep.mubr.f32.mxu0 0.0
  %v1412 = vand.u32 %v118, 4294901760
  %1413 = vmatmul.mubr.f32.gmra.mrb[0].mxu0 %v1412
  %v1414 = vpop.f32.mrb[0].mxu0
  %v1415 = vadd.f32 %v1238, %v1414
  %v1416 = vpop.f32.mrb[0].mxu0
  %1417 = vmatprep.mubr.f32.mxu0 0.0
  %v1418 = vand.u32 %v121, 4294901760
  %1419 = vmatmul.mubr.f32.gmra.mrb[0].mxu0 %v1418
  %v1420 = vpop.f32.mrb[0].mxu0
  %v1421 = vadd.f32 %v1244, %v1420
  %v1422 = vpop.f32.mrb[0].mxu0
  %1423 = vmatprep.mubr.f32.mxu0 0.0
  %v1424 = vand.u32 %v124, 4294901760
  %1425 = vmatmul.mubr.f32.gmra.mrb[0].mxu0 %v1424
  %v1426 = vpop.f32.mrb[0].mxu0
  %v1427 = vadd.f32 %v1250, %v1426
  %v1428 = vpop.f32.mrb[0].mxu0
  %1429 = vmatprep.mubr.f32.mxu0 0.0
  %v1430 = vand.u32 %v127, 4294901760
  %1431 = vmatmul.mubr.f32.gmra.mrb[0].mxu0 %v1430
  %v1432 = vpop.f32.mrb[0].mxu0
  %v1433 = vadd.f32 %v1256, %v1432
  %v1434 = vpop.f32.mrb[0].mxu0
  %1435 = vmatprep.mubr.f32.mxu0 0.0
  %v1436 = vand.u32 %v130, 4294901760
  %1437 = vmatmul.mubr.f32.gmra.mrb[0].mxu0 %v1436
  %v1438 = vpop.f32.mrb[0].mxu0
  %v1439 = vadd.f32 %v1262, %v1438
  %v1440 = vpop.f32.mrb[0].mxu0
  %1441 = vmatprep.mubr.f32.mxu0 0.0
  %v1442 = vand.u32 %v133, 4294901760
  %1443 = vmatmul.mubr.f32.gmra.mrb[0].mxu0 %v1442
  %v1444 = vpop.f32.mrb[0].mxu0
  %v1445 = vadd.f32 %v1268, %v1444
  %v1446 = vpop.f32.mrb[0].mxu0
  %1447 = vmatprep.mubr.f32.mxu0 0.0
  %v1448 = vand.u32 %v136, 4294901760
  %1449 = vmatmul.mubr.f32.gmra.mrb[0].mxu0 %v1448
  %v1450 = vpop.f32.mrb[0].mxu0
  %v1451 = vadd.f32 %v1274, %v1450
  %v1452 = vpop.f32.mrb[0].mxu0
  %1453 = vmatprep.mubr.f32.mxu0 0.0
  %v1454 = vand.u32 %v139, 4294901760
  %1455 = vmatmul.mubr.f32.gmra.mrb[0].mxu0 %v1454
  %v1456 = vpop.f32.mrb[0].mxu0
  %v1457 = vadd.f32 %v1280, %v1456
  %v1458 = vpop.f32.mrb[0].mxu0
  %1459 = vmatprep.mubr.f32.mxu0 0.0
  %v1460 = vand.u32 %v142, 4294901760
  %1461 = vmatmul.mubr.f32.gmra.mrb[0].mxu0 %v1460
  %v1462 = vpop.f32.mrb[0].mxu0
  %v1463 = vadd.f32 %v1286, %v1462
  %v1464 = vpop.f32.mrb[0].mxu0
  %1465 = vmatprep.mubr.f32.mxu0 0.0
  %v1466 = vand.u32 %v145, 4294901760
  %1467 = vmatmul.mubr.f32.gmra.mrb[0].mxu0 %v1466
  %v1468 = vpop.f32.mrb[0].mxu0
  %v1469 = vadd.f32 %v1292, %v1468
  %v1470 = vpop.f32.mrb[0].mxu0
  %1471 = vmatprep.mubr.f32.mxu0 0.0
  %v1472 = vand.u32 %v148, 4294901760
  %1473 = vmatmul.mubr.f32.gmra.mrb[0].mxu0 %v1472
  %v1474 = vpop.f32.mrb[0].mxu0
  %v1475 = vadd.f32 %v1298, %v1474
  %v1476 = vpop.f32.mrb[0].mxu0
  %1477 = vmatprep.mubr.f32.mxu0 0.0
  %v1478 = vand.u32 %v151, 4294901760
  %1479 = vmatmul.mubr.f32.gmra.mrb[0].mxu0 %v1478
  %v1480 = vpop.f32.mrb[0].mxu0
  %v1481 = vadd.f32 %v1304, %v1480
  %v1482 = vpop.f32.mrb[0].mxu0
  %1483 = vmatprep.mubr.f32.mxu0 0.0
  %v1484 = vand.u32 %v154, 4294901760
  %1485 = vmatmul.mubr.f32.gmra.mrb[0].mxu0 %v1484
  %v1486 = vpop.f32.mrb[0].mxu0
  %v1487 = vadd.f32 %v1310, %v1486
  %v1488 = vpop.f32.mrb[0].mxu0
  %1489 = vdwg.mxu0
  %v1490 = vadd.f32 %v1397, %v20
  %v1491 = vadd.f32 %v1403, %v21
  %v1492 = vadd.f32 %v1409, %v22
  %v1493 = vadd.f32 %v1415, %v23
  %v1494 = vadd.f32 %v1421, %v24
  %v1495 = vadd.f32 %v1427, %v25
  %v1496 = vadd.f32 %v1433, %v26
  %v1497 = vadd.f32 %v1439, %v27
  %v1498 = vadd.f32 %v1445, %v28
  %v1499 = vadd.f32 %v1451, %v29
  %v1500 = vadd.f32 %v1457, %v30
  %v1501 = vadd.f32 %v1463, %v31
  %v1502 = vadd.f32 %v1469, %v32
  %v1503 = vadd.f32 %v1475, %v33
  %v1504 = vadd.f32 %v1481, %v34
  %v1505 = vadd.f32 %v1487, %v35
  %1506 = vmax.xlane.f32.xlu0 %v1490
  %v1507 = vpop.xlane.xlu0 %1506
  %1508 = vmax.xlane.f32.xlu0 %v1491
  %v1509 = vpop.xlane.xlu0 %1508
  %1510 = vmax.xlane.f32.xlu0 %v1492
  %v1511 = vpop.xlane.xlu0 %1510
  %1512 = vmax.xlane.f32.xlu0 %v1493
  %v1513 = vpop.xlane.xlu0 %1512
  %1514 = vmax.xlane.f32.xlu0 %v1494
  %v1515 = vpop.xlane.xlu0 %1514
  %1516 = vmax.xlane.f32.xlu0 %v1495
  %v1517 = vpop.xlane.xlu0 %1516
  %1518 = vmax.xlane.f32.xlu0 %v1496
  %v1519 = vpop.xlane.xlu0 %1518
  %1520 = vmax.xlane.f32.xlu0 %v1497
  %v1521 = vpop.xlane.xlu0 %1520
  %1522 = vmax.xlane.f32.xlu0 %v1498
  %v1523 = vpop.xlane.xlu0 %1522
  %1524 = vmax.xlane.f32.xlu0 %v1499
  %v1525 = vpop.xlane.xlu0 %1524
  %1526 = vmax.xlane.f32.xlu0 %v1500
  %v1527 = vpop.xlane.xlu0 %1526
  %1528 = vmax.xlane.f32.xlu0 %v1501
  %v1529 = vpop.xlane.xlu0 %1528
  %1530 = vmax.xlane.f32.xlu0 %v1502
  %v1531 = vpop.xlane.xlu0 %1530
  %1532 = vmax.xlane.f32.xlu0 %v1503
  %v1533 = vpop.xlane.xlu0 %1532
  %1534 = vmax.xlane.f32.xlu0 %v1504
  %v1535 = vpop.xlane.xlu0 %1534
  %1536 = vmax.xlane.f32.xlu0 %v1505
  %v1537 = vpop.xlane.xlu0 %1536
  %v1538 = vsub.f32 %v1490, %v1507
  %v1539 = vsub.f32 %v1491, %v1509
  %v1540 = vsub.f32 %v1492, %v1511
  %v1541 = vsub.f32 %v1493, %v1513
  %v1542 = vsub.f32 %v1494, %v1515
  %v1543 = vsub.f32 %v1495, %v1517
  %v1544 = vsub.f32 %v1496, %v1519
  %v1545 = vsub.f32 %v1497, %v1521
  %v1546 = vsub.f32 %v1498, %v1523
  %v1547 = vsub.f32 %v1499, %v1525
  %v1548 = vsub.f32 %v1500, %v1527
  %v1549 = vsub.f32 %v1501, %v1529
  %v1550 = vsub.f32 %v1502, %v1531
  %v1551 = vsub.f32 %v1503, %v1533
  %v1552 = vsub.f32 %v1504, %v1535
  %v1553 = vsub.f32 %v1505, %v1537
  %v1554 = vmul.f32 %v1538, 1.442695
  %v1555 = vpow.pop %v1554
  %v1556 = vmul.f32 %v1539, 1.442695
  %v1557 = vpow.pop %v1556
  %v1558 = vmul.f32 %v1540, 1.442695
  %v1559 = vpow.pop %v1558
  %v1560 = vmul.f32 %v1541, 1.442695
  %v1561 = vpow.pop %v1560
  %v1562 = vmul.f32 %v1542, 1.442695
  %v1563 = vpow.pop %v1562
  %v1564 = vmul.f32 %v1543, 1.442695
  %v1565 = vpow.pop %v1564
  %v1566 = vmul.f32 %v1544, 1.442695
  %v1567 = vpow.pop %v1566
  %v1568 = vmul.f32 %v1545, 1.442695
  %v1569 = vpow.pop %v1568
  %v1570 = vmul.f32 %v1546, 1.442695
  %v1571 = vpow.pop %v1570
  %v1572 = vmul.f32 %v1547, 1.442695
  %v1573 = vpow.pop %v1572
  %v1574 = vmul.f32 %v1548, 1.442695
  %v1575 = vpow.pop %v1574
  %v1576 = vmul.f32 %v1549, 1.442695
  %v1577 = vpow.pop %v1576
  %v1578 = vmul.f32 %v1550, 1.442695
  %v1579 = vpow.pop %v1578
  %v1580 = vmul.f32 %v1551, 1.442695
  %v1581 = vpow.pop %v1580
  %v1582 = vmul.f32 %v1552, 1.442695
  %v1583 = vpow.pop %v1582
  %v1584 = vmul.f32 %v1553, 1.442695
  %v1585 = vpow.pop %v1584
  %1586 = vadd.xlane.f32.xlu0 %v1555
  %v1587 = vpop.xlane.xlu0 %1586
  %1588 = vadd.xlane.f32.xlu0 %v1557
  %v1589 = vpop.xlane.xlu0 %1588
  %1590 = vadd.xlane.f32.xlu0 %v1559
  %v1591 = vpop.xlane.xlu0 %1590
  %1592 = vadd.xlane.f32.xlu0 %v1561
  %v1593 = vpop.xlane.xlu0 %1592
  %1594 = vadd.xlane.f32.xlu0 %v1563
  %v1595 = vpop.xlane.xlu0 %1594
  %1596 = vadd.xlane.f32.xlu0 %v1565
  %v1597 = vpop.xlane.xlu0 %1596
  %1598 = vadd.xlane.f32.xlu0 %v1567
  %v1599 = vpop.xlane.xlu0 %1598
  %1600 = vadd.xlane.f32.xlu0 %v1569
  %v1601 = vpop.xlane.xlu0 %1600
  %1602 = vadd.xlane.f32.xlu0 %v1571
  %v1603 = vpop.xlane.xlu0 %1602
  %1604 = vadd.xlane.f32.xlu0 %v1573
  %v1605 = vpop.xlane.xlu0 %1604
  %1606 = vadd.xlane.f32.xlu0 %v1575
  %v1607 = vpop.xlane.xlu0 %1606
  %1608 = vadd.xlane.f32.xlu0 %v1577
  %v1609 = vpop.xlane.xlu0 %1608
  %1610 = vadd.xlane.f32.xlu0 %v1579
  %v1611 = vpop.xlane.xlu0 %1610
  %1612 = vadd.xlane.f32.xlu0 %v1581
  %v1613 = vpop.xlane.xlu0 %1612
  %1614 = vadd.xlane.f32.xlu0 %v1583
  %v1615 = vpop.xlane.xlu0 %1614
  %1616 = vadd.xlane.f32.xlu0 %v1585
  %v1617 = vpop.xlane.xlu0 %1616
  %v1618 = vrcp.pop %v1587
  %v1619 = vrcp.pop %v1589
  %v1620 = vrcp.pop %v1591
  %v1621 = vrcp.pop %v1593
  %v1622 = vrcp.pop %v1595
  %v1623 = vrcp.pop %v1597
  %v1624 = vrcp.pop %v1599
  %v1625 = vrcp.pop %v1601
  %v1626 = vrcp.pop %v1603
  %v1627 = vrcp.pop %v1605
  %v1628 = vrcp.pop %v1607
  %v1629 = vrcp.pop %v1609
  %v1630 = vrcp.pop %v1611
  %v1631 = vrcp.pop %v1613
  %v1632 = vrcp.pop %v1615
  %v1633 = vrcp.pop %v1617
  %v1634 = vmul.f32 %v1555, %v1618
  %v1635 = vmul.f32 %v1557, %v1619
  %v1636 = vmul.f32 %v1559, %v1620
  %v1637 = vmul.f32 %v1561, %v1621
  %v1638 = vmul.f32 %v1563, %v1622
  %v1639 = vmul.f32 %v1565, %v1623
  %v1640 = vmul.f32 %v1567, %v1624
  %v1641 = vmul.f32 %v1569, %v1625
  %v1642 = vmul.f32 %v1571, %v1626
  %v1643 = vmul.f32 %v1573, %v1627
  %v1644 = vmul.f32 %v1575, %v1628
  %v1645 = vmul.f32 %v1577, %v1629
  %v1646 = vmul.f32 %v1579, %v1630
  %v1647 = vmul.f32 %v1581, %v1631
  %v1648 = vmul.f32 %v1583, %v1632
  %v1649 = vmul.f32 %v1585, %v1633
  %1650 = vmatprep.subr.mxu0 0.0
  %v1651 = vand.u32 %v84, 4294901760
  %1652 = vmatpush1.msra.mxu0 %v1651
  %1653 = vmatprep.subr.mxu0 0.0
  %v1654 = vand.u32 %v85, 4294901760
  %1655 = vmatpush1.msra.mxu0 %v1654
  %1656 = vmatprep.subr.mxu0 0.0
  %v1657 = vand.u32 %v86, 4294901760
  %1658 = vmatpush1.msra.mxu0 %v1657
  %1659 = vmatprep.subr.mxu0 0.0
  %v1660 = vand.u32 %v87, 4294901760
  %1661 = vmatpush1.msra.mxu0 %v1660
  %1662 = vmatprep.subr.mxu0 0.0
  %v1663 = vand.u32 %v88, 4294901760
  %1664 = vmatpush1.msra.mxu0 %v1663
  %1665 = vmatprep.subr.mxu0 0.0
  %v1666 = vand.u32 %v89, 4294901760
  %1667 = vmatpush1.msra.mxu0 %v1666
  %1668 = vmatprep.subr.mxu0 0.0
  %v1669 = vand.u32 %v90, 4294901760
  %1670 = vmatpush1.msra.mxu0 %v1669
  %1671 = vmatprep.subr.mxu0 0.0
  %v1672 = vand.u32 %v91, 4294901760
  %1673 = vmatpush1.msra.mxu0 %v1672
  %1674 = vmatprep.subr.mxu0 0.0
  %v1675 = vand.u32 %v92, 4294901760
  %1676 = vmatpush1.msra.mxu0 %v1675
  %1677 = vmatprep.subr.mxu0 0.0
  %v1678 = vand.u32 %v93, 4294901760
  %1679 = vmatpush1.msra.mxu0 %v1678
  %1680 = vmatprep.subr.mxu0 0.0
  %v1681 = vand.u32 %v94, 4294901760
  %1682 = vmatpush1.msra.mxu0 %v1681
  %1683 = vmatprep.subr.mxu0 0.0
  %v1684 = vand.u32 %v95, 4294901760
  %1685 = vmatpush1.msra.mxu0 %v1684
  %1686 = vmatprep.subr.mxu0 0.0
  %v1687 = vand.u32 %v96, 4294901760
  %1688 = vmatpush1.msra.mxu0 %v1687
  %1689 = vmatprep.subr.mxu0 0.0
  %v1690 = vand.u32 %v97, 4294901760
  %1691 = vmatpush1.msra.mxu0 %v1690
  %1692 = vmatprep.subr.mxu0 0.0
  %v1693 = vand.u32 %v98, 4294901760
  %1694 = vmatpush1.msra.mxu0 %v1693
  %1695 = vmatprep.subr.mxu0 0.0
  %v1696 = vand.u32 %v99, 4294901760
  %1697 = vmatpush1.msra.mxu0 %v1696
  %1698 = vmatprep.subr.mxu0 0.0
  %1699 = vmatpush1.msra.mxu0 0.0
  %1700 = vmatprep.subr.mxu0 0.0
  %1701 = vmatpush1.msra.mxu0 0.0
  %1702 = vmatprep.subr.mxu0 0.0
  %1703 = vmatpush1.msra.mxu0 0.0
  %1704 = vmatprep.subr.mxu0 0.0
  %1705 = vmatpush1.msra.mxu0 0.0
  %1706 = vmatprep.subr.mxu0 0.0
  %1707 = vmatpush1.msra.mxu0 0.0
  %1708 = vmatprep.subr.mxu0 0.0
  %1709 = vmatpush1.msra.mxu0 0.0
  %1710 = vmatprep.subr.mxu0 0.0
  %1711 = vmatpush1.msra.mxu0 0.0
  %1712 = vmatprep.subr.mxu0 0.0
  %1713 = vmatpush1.msra.mxu0 0.0
  %1714 = vmatprep.subr.mxu0 0.0
  %1715 = vmatpush1.msra.mxu0 0.0
  %1716 = vmatprep.subr.mxu0 0.0
  %1717 = vmatpush1.msra.mxu0 0.0
  %1718 = vmatprep.subr.mxu0 0.0
  %1719 = vmatpush1.msra.mxu0 0.0
  %1720 = vmatprep.subr.mxu0 0.0
  %1721 = vmatpush1.msra.mxu0 0.0
  %1722 = vmatprep.subr.mxu0 0.0
  %1723 = vmatpush1.msra.mxu0 0.0
  %1724 = vmatprep.subr.mxu0 0.0
  %1725 = vmatpush1.msra.mxu0 0.0
  %1726 = vmatprep.subr.mxu0 0.0
  %1727 = vmatpush1.msra.mxu0 0.0
  %1728 = vmatprep.subr.mxu0 0.0
  %1729 = vmatpush1.msra.mxu0 0.0
  %1730 = vmatprep.mubr.f32.mxu0 0.0
  %v1731 = vand.u32 %v1634, 4294901760
  %v1732 = vsub.f32 %v1634, %v1731
  %v1733 = vand.u32 %v1732, 4294901760
  %v1734 = vsub.f32 %v1732, %v1733
  %v1735 = vand.u32 %v1734, 4294901760
  %1736 = vmatmul.mubr.f32.gmra.mrb[0].mxu0 %v1735
  %v1737 = vpop.f32.mrb[0].mxu0
  %v1738 = vadd.f32 0.0, %v1737
  %v1739 = vpop.f32.mrb[0].mxu0
  %1740 = vmatprep.mubr.f32.mxu0 0.0
  %v1741 = vand.u32 %v1635, 4294901760
  %v1742 = vsub.f32 %v1635, %v1741
  %v1743 = vand.u32 %v1742, 4294901760
  %v1744 = vsub.f32 %v1742, %v1743
  %v1745 = vand.u32 %v1744, 4294901760
  %1746 = vmatmul.mubr.f32.gmra.mrb[0].mxu0 %v1745
  %v1747 = vpop.f32.mrb[0].mxu0
  %v1748 = vadd.f32 0.0, %v1747
  %v1749 = vpop.f32.mrb[0].mxu0
  %1750 = vmatprep.mubr.f32.mxu0 0.0
  %v1751 = vand.u32 %v1636, 4294901760
  %v1752 = vsub.f32 %v1636, %v1751
  %v1753 = vand.u32 %v1752, 4294901760
  %v1754 = vsub.f32 %v1752, %v1753
  %v1755 = vand.u32 %v1754, 4294901760
  %1756 = vmatmul.mubr.f32.gmra.mrb[0].mxu0 %v1755
  %v1757 = vpop.f32.mrb[0].mxu0
  %v1758 = vadd.f32 0.0, %v1757
  %v1759 = vpop.f32.mrb[0].mxu0
  %1760 = vmatprep.mubr.f32.mxu0 0.0
  %v1761 = vand.u32 %v1637, 4294901760
  %v1762 = vsub.f32 %v1637, %v1761
  %v1763 = vand.u32 %v1762, 4294901760
  %v1764 = vsub.f32 %v1762, %v1763
  %v1765 = vand.u32 %v1764, 4294901760
  %1766 = vmatmul.mubr.f32.gmra.mrb[0].mxu0 %v1765
  %v1767 = vpop.f32.mrb[0].mxu0
  %v1768 = vadd.f32 0.0, %v1767
  %v1769 = vpop.f32.mrb[0].mxu0
  %1770 = vmatprep.mubr.f32.mxu0 0.0
  %v1771 = vand.u32 %v1638, 4294901760
  %v1772 = vsub.f32 %v1638, %v1771
  %v1773 = vand.u32 %v1772, 4294901760
  %v1774 = vsub.f32 %v1772, %v1773
  %v1775 = vand.u32 %v1774, 4294901760
  %1776 = vmatmul.mubr.f32.gmra.mrb[0].mxu0 %v1775
  %v1777 = vpop.f32.mrb[0].mxu0
  %v1778 = vadd.f32 0.0, %v1777
  %v1779 = vpop.f32.mrb[0].mxu0
  %1780 = vmatprep.mubr.f32.mxu0 0.0
  %v1781 = vand.u32 %v1639, 4294901760
  %v1782 = vsub.f32 %v1639, %v1781
  %v1783 = vand.u32 %v1782, 4294901760
  %v1784 = vsub.f32 %v1782, %v1783
  %v1785 = vand.u32 %v1784, 4294901760
  %1786 = vmatmul.mubr.f32.gmra.mrb[0].mxu0 %v1785
  %v1787 = vpop.f32.mrb[0].mxu0
  %v1788 = vadd.f32 0.0, %v1787
  %v1789 = vpop.f32.mrb[0].mxu0
  %1790 = vmatprep.mubr.f32.mxu0 0.0
  %v1791 = vand.u32 %v1640, 4294901760
  %v1792 = vsub.f32 %v1640, %v1791
  %v1793 = vand.u32 %v1792, 4294901760
  %v1794 = vsub.f32 %v1792, %v1793
  %v1795 = vand.u32 %v1794, 4294901760
  %1796 = vmatmul.mubr.f32.gmra.mrb[0].mxu0 %v1795
  %v1797 = vpop.f32.mrb[0].mxu0
  %v1798 = vadd.f32 0.0, %v1797
  %v1799 = vpop.f32.mrb[0].mxu0
  %1800 = vmatprep.mubr.f32.mxu0 0.0
  %v1801 = vand.u32 %v1641, 4294901760
  %v1802 = vsub.f32 %v1641, %v1801
  %v1803 = vand.u32 %v1802, 4294901760
  %v1804 = vsub.f32 %v1802, %v1803
  %v1805 = vand.u32 %v1804, 4294901760
  %1806 = vmatmul.mubr.f32.gmra.mrb[0].mxu0 %v1805
  %v1807 = vpop.f32.mrb[0].mxu0
  %v1808 = vadd.f32 0.0, %v1807
  %v1809 = vpop.f32.mrb[0].mxu0
  %1810 = vmatprep.mubr.f32.mxu0 0.0
  %v1811 = vand.u32 %v1642, 4294901760
  %v1812 = vsub.f32 %v1642, %v1811
  %v1813 = vand.u32 %v1812, 4294901760
  %v1814 = vsub.f32 %v1812, %v1813
  %v1815 = vand.u32 %v1814, 4294901760
  %1816 = vmatmul.mubr.f32.gmra.mrb[0].mxu0 %v1815
  %v1817 = vpop.f32.mrb[0].mxu0
  %v1818 = vadd.f32 0.0, %v1817
  %v1819 = vpop.f32.mrb[0].mxu0
  %1820 = vmatprep.mubr.f32.mxu0 0.0
  %v1821 = vand.u32 %v1643, 4294901760
  %v1822 = vsub.f32 %v1643, %v1821
  %v1823 = vand.u32 %v1822, 4294901760
  %v1824 = vsub.f32 %v1822, %v1823
  %v1825 = vand.u32 %v1824, 4294901760
  %1826 = vmatmul.mubr.f32.gmra.mrb[0].mxu0 %v1825
  %v1827 = vpop.f32.mrb[0].mxu0
  %v1828 = vadd.f32 0.0, %v1827
  %v1829 = vpop.f32.mrb[0].mxu0
  %1830 = vmatprep.mubr.f32.mxu0 0.0
  %v1831 = vand.u32 %v1644, 4294901760
  %v1832 = vsub.f32 %v1644, %v1831
  %v1833 = vand.u32 %v1832, 4294901760
  %v1834 = vsub.f32 %v1832, %v1833
  %v1835 = vand.u32 %v1834, 4294901760
  %1836 = vmatmul.mubr.f32.gmra.mrb[0].mxu0 %v1835
  %v1837 = vpop.f32.mrb[0].mxu0
  %v1838 = vadd.f32 0.0, %v1837
  %v1839 = vpop.f32.mrb[0].mxu0
  %1840 = vmatprep.mubr.f32.mxu0 0.0
  %v1841 = vand.u32 %v1645, 4294901760
  %v1842 = vsub.f32 %v1645, %v1841
  %v1843 = vand.u32 %v1842, 4294901760
  %v1844 = vsub.f32 %v1842, %v1843
  %v1845 = vand.u32 %v1844, 4294901760
  %1846 = vmatmul.mubr.f32.gmra.mrb[0].mxu0 %v1845
  %v1847 = vpop.f32.mrb[0].mxu0
  %v1848 = vadd.f32 0.0, %v1847
  %v1849 = vpop.f32.mrb[0].mxu0
  %1850 = vmatprep.mubr.f32.mxu0 0.0
  %v1851 = vand.u32 %v1646, 4294901760
  %v1852 = vsub.f32 %v1646, %v1851
  %v1853 = vand.u32 %v1852, 4294901760
  %v1854 = vsub.f32 %v1852, %v1853
  %v1855 = vand.u32 %v1854, 4294901760
  %1856 = vmatmul.mubr.f32.gmra.mrb[0].mxu0 %v1855
  %v1857 = vpop.f32.mrb[0].mxu0
  %v1858 = vadd.f32 0.0, %v1857
  %v1859 = vpop.f32.mrb[0].mxu0
  %1860 = vmatprep.mubr.f32.mxu0 0.0
  %v1861 = vand.u32 %v1647, 4294901760
  %v1862 = vsub.f32 %v1647, %v1861
  %v1863 = vand.u32 %v1862, 4294901760
  %v1864 = vsub.f32 %v1862, %v1863
  %v1865 = vand.u32 %v1864, 4294901760
  %1866 = vmatmul.mubr.f32.gmra.mrb[0].mxu0 %v1865
  %v1867 = vpop.f32.mrb[0].mxu0
  %v1868 = vadd.f32 0.0, %v1867
  %v1869 = vpop.f32.mrb[0].mxu0
  %1870 = vmatprep.mubr.f32.mxu0 0.0
  %v1871 = vand.u32 %v1648, 4294901760
  %v1872 = vsub.f32 %v1648, %v1871
  %v1873 = vand.u32 %v1872, 4294901760
  %v1874 = vsub.f32 %v1872, %v1873
  %v1875 = vand.u32 %v1874, 4294901760
  %1876 = vmatmul.mubr.f32.gmra.mrb[0].mxu0 %v1875
  %v1877 = vpop.f32.mrb[0].mxu0
  %v1878 = vadd.f32 0.0, %v1877
  %v1879 = vpop.f32.mrb[0].mxu0
  %1880 = vmatprep.mubr.f32.mxu0 0.0
  %v1881 = vand.u32 %v1649, 4294901760
  %v1882 = vsub.f32 %v1649, %v1881
  %v1883 = vand.u32 %v1882, 4294901760
  %v1884 = vsub.f32 %v1882, %v1883
  %v1885 = vand.u32 %v1884, 4294901760
  %1886 = vmatmul.mubr.f32.gmra.mrb[0].mxu0 %v1885
  %v1887 = vpop.f32.mrb[0].mxu0
  %v1888 = vadd.f32 0.0, %v1887
  %v1889 = vpop.f32.mrb[0].mxu0
  %1890 = vdwg.mxu0
  %1891 = vmatprep.subr.mxu0 0.0
  %v1892 = vand.u32 %v84, 4294901760
  %v1893 = vsub.f32 %v84, %v1892
  %v1894 = vand.u32 %v1893, 4294901760
  %v1895 = vsub.f32 %v1893, %v1894
  %v1896 = vand.u32 %v1895, 4294901760
  %1897 = vmatpush1.msra.mxu0 %v1896
  %1898 = vmatprep.subr.mxu0 0.0
  %v1899 = vand.u32 %v85, 4294901760
  %v1900 = vsub.f32 %v85, %v1899
  %v1901 = vand.u32 %v1900, 4294901760
  %v1902 = vsub.f32 %v1900, %v1901
  %v1903 = vand.u32 %v1902, 4294901760
  %1904 = vmatpush1.msra.mxu0 %v1903
  %1905 = vmatprep.subr.mxu0 0.0
  %v1906 = vand.u32 %v86, 4294901760
  %v1907 = vsub.f32 %v86, %v1906
  %v1908 = vand.u32 %v1907, 4294901760
  %v1909 = vsub.f32 %v1907, %v1908
  %v1910 = vand.u32 %v1909, 4294901760
  %1911 = vmatpush1.msra.mxu0 %v1910
  %1912 = vmatprep.subr.mxu0 0.0
  %v1913 = vand.u32 %v87, 4294901760
  %v1914 = vsub.f32 %v87, %v1913
  %v1915 = vand.u32 %v1914, 4294901760
  %v1916 = vsub.f32 %v1914, %v1915
  %v1917 = vand.u32 %v1916, 4294901760
  %1918 = vmatpush1.msra.mxu0 %v1917
  %1919 = vmatprep.subr.mxu0 0.0
  %v1920 = vand.u32 %v88, 4294901760
  %v1921 = vsub.f32 %v88, %v1920
  %v1922 = vand.u32 %v1921, 4294901760
  %v1923 = vsub.f32 %v1921, %v1922
  %v1924 = vand.u32 %v1923, 4294901760
  %1925 = vmatpush1.msra.mxu0 %v1924
  %1926 = vmatprep.subr.mxu0 0.0
  %v1927 = vand.u32 %v89, 4294901760
  %v1928 = vsub.f32 %v89, %v1927
  %v1929 = vand.u32 %v1928, 4294901760
  %v1930 = vsub.f32 %v1928, %v1929
  %v1931 = vand.u32 %v1930, 4294901760
  %1932 = vmatpush1.msra.mxu0 %v1931
  %1933 = vmatprep.subr.mxu0 0.0
  %v1934 = vand.u32 %v90, 4294901760
  %v1935 = vsub.f32 %v90, %v1934
  %v1936 = vand.u32 %v1935, 4294901760
  %v1937 = vsub.f32 %v1935, %v1936
  %v1938 = vand.u32 %v1937, 4294901760
  %1939 = vmatpush1.msra.mxu0 %v1938
  %1940 = vmatprep.subr.mxu0 0.0
  %v1941 = vand.u32 %v91, 4294901760
  %v1942 = vsub.f32 %v91, %v1941
  %v1943 = vand.u32 %v1942, 4294901760
  %v1944 = vsub.f32 %v1942, %v1943
  %v1945 = vand.u32 %v1944, 4294901760
  %1946 = vmatpush1.msra.mxu0 %v1945
  %1947 = vmatprep.subr.mxu0 0.0
  %v1948 = vand.u32 %v92, 4294901760
  %v1949 = vsub.f32 %v92, %v1948
  %v1950 = vand.u32 %v1949, 4294901760
  %v1951 = vsub.f32 %v1949, %v1950
  %v1952 = vand.u32 %v1951, 4294901760
  %1953 = vmatpush1.msra.mxu0 %v1952
  %1954 = vmatprep.subr.mxu0 0.0
  %v1955 = vand.u32 %v93, 4294901760
  %v1956 = vsub.f32 %v93, %v1955
  %v1957 = vand.u32 %v1956, 4294901760
  %v1958 = vsub.f32 %v1956, %v1957
  %v1959 = vand.u32 %v1958, 4294901760
  %1960 = vmatpush1.msra.mxu0 %v1959
  %1961 = vmatprep.subr.mxu0 0.0
  %v1962 = vand.u32 %v94, 4294901760
  %v1963 = vsub.f32 %v94, %v1962
  %v1964 = vand.u32 %v1963, 4294901760
  %v1965 = vsub.f32 %v1963, %v1964
  %v1966 = vand.u32 %v1965, 4294901760
  %1967 = vmatpush1.msra.mxu0 %v1966
  %1968 = vmatprep.subr.mxu0 0.0
  %v1969 = vand.u32 %v95, 4294901760
  %v1970 = vsub.f32 %v95, %v1969
  %v1971 = vand.u32 %v1970, 4294901760
  %v1972 = vsub.f32 %v1970, %v1971
  %v1973 = vand.u32 %v1972, 4294901760
  %1974 = vmatpush1.msra.mxu0 %v1973
  %1975 = vmatprep.subr.mxu0 0.0
  %v1976 = vand.u32 %v96, 4294901760
  %v1977 = vsub.f32 %v96, %v1976
  %v1978 = vand.u32 %v1977, 4294901760
  %v1979 = vsub.f32 %v1977, %v1978
  %v1980 = vand.u32 %v1979, 4294901760
  %1981 = vmatpush1.msra.mxu0 %v1980
  %1982 = vmatprep.subr.mxu0 0.0
  %v1983 = vand.u32 %v97, 4294901760
  %v1984 = vsub.f32 %v97, %v1983
  %v1985 = vand.u32 %v1984, 4294901760
  %v1986 = vsub.f32 %v1984, %v1985
  %v1987 = vand.u32 %v1986, 4294901760
  %1988 = vmatpush1.msra.mxu0 %v1987
  %1989 = vmatprep.subr.mxu0 0.0
  %v1990 = vand.u32 %v98, 4294901760
  %v1991 = vsub.f32 %v98, %v1990
  %v1992 = vand.u32 %v1991, 4294901760
  %v1993 = vsub.f32 %v1991, %v1992
  %v1994 = vand.u32 %v1993, 4294901760
  %1995 = vmatpush1.msra.mxu0 %v1994
  %1996 = vmatprep.subr.mxu0 0.0
  %v1997 = vand.u32 %v99, 4294901760
  %v1998 = vsub.f32 %v99, %v1997
  %v1999 = vand.u32 %v1998, 4294901760
  %v2000 = vsub.f32 %v1998, %v1999
  %v2001 = vand.u32 %v2000, 4294901760
  %2002 = vmatpush1.msra.mxu0 %v2001
  %2003 = vmatprep.subr.mxu0 0.0
  %2004 = vmatpush1.msra.mxu0 0.0
  %2005 = vmatprep.subr.mxu0 0.0
  %2006 = vmatpush1.msra.mxu0 0.0
  %2007 = vmatprep.subr.mxu0 0.0
  %2008 = vmatpush1.msra.mxu0 0.0
  %2009 = vmatprep.subr.mxu0 0.0
  %2010 = vmatpush1.msra.mxu0 0.0
  %2011 = vmatprep.subr.mxu0 0.0
  %2012 = vmatpush1.msra.mxu0 0.0
  %2013 = vmatprep.subr.mxu0 0.0
  %2014 = vmatpush1.msra.mxu0 0.0
  %2015 = vmatprep.subr.mxu0 0.0
  %2016 = vmatpush1.msra.mxu0 0.0
  %2017 = vmatprep.subr.mxu0 0.0
  %2018 = vmatpush1.msra.mxu0 0.0
  %2019 = vmatprep.subr.mxu0 0.0
  %2020 = vmatpush1.msra.mxu0 0.0
  %2021 = vmatprep.subr.mxu0 0.0
  %2022 = vmatpush1.msra.mxu0 0.0
  %2023 = vmatprep.subr.mxu0 0.0
  %2024 = vmatpush1.msra.mxu0 0.0
  %2025 = vmatprep.subr.mxu0 0.0
  %2026 = vmatpush1.msra.mxu0 0.0
  %2027 = vmatprep.subr.mxu0 0.0
  %2028 = vmatpush1.msra.mxu0 0.0
  %2029 = vmatprep.subr.mxu0 0.0
  %2030 = vmatpush1.msra.mxu0 0.0
  %2031 = vmatprep.subr.mxu0 0.0
  %2032 = vmatpush1.msra.mxu0 0.0
  %2033 = vmatprep.subr.mxu0 0.0
  %2034 = vmatpush1.msra.mxu0 0.0
  %2035 = vmatprep.mubr.f32.mxu0 0.0
  %v2036 = vand.u32 %v1634, 4294901760
  %2037 = vmatmul.mubr.f32.gmra.mrb[0].mxu0 %v2036
  %v2038 = vpop.f32.mrb[0].mxu0
  %v2039 = vadd.f32 %v1738, %v2038
  %v2040 = vpop.f32.mrb[0].mxu0
  %2041 = vmatprep.mubr.f32.mxu0 0.0
  %v2042 = vand.u32 %v1635, 4294901760
  %2043 = vmatmul.mubr.f32.gmra.mrb[0].mxu0 %v2042
  %v2044 = vpop.f32.mrb[0].mxu0
  %v2045 = vadd.f32 %v1748, %v2044
  %v2046 = vpop.f32.mrb[0].mxu0
  %2047 = vmatprep.mubr.f32.mxu0 0.0
  %v2048 = vand.u32 %v1636, 4294901760
  %2049 = vmatmul.mubr.f32.gmra.mrb[0].mxu0 %v2048
  %v2050 = vpop.f32.mrb[0].mxu0
  %v2051 = vadd.f32 %v1758, %v2050
  %v2052 = vpop.f32.mrb[0].mxu0
  %2053 = vmatprep.mubr.f32.mxu0 0.0
  %v2054 = vand.u32 %v1637, 4294901760
  %2055 = vmatmul.mubr.f32.gmra.mrb[0].mxu0 %v2054
  %v2056 = vpop.f32.mrb[0].mxu0
  %v2057 = vadd.f32 %v1768, %v2056
  %v2058 = vpop.f32.mrb[0].mxu0
  %2059 = vmatprep.mubr.f32.mxu0 0.0
  %v2060 = vand.u32 %v1638, 4294901760
  %2061 = vmatmul.mubr.f32.gmra.mrb[0].mxu0 %v2060
  %v2062 = vpop.f32.mrb[0].mxu0
  %v2063 = vadd.f32 %v1778, %v2062
  %v2064 = vpop.f32.mrb[0].mxu0
  %2065 = vmatprep.mubr.f32.mxu0 0.0
  %v2066 = vand.u32 %v1639, 4294901760
  %2067 = vmatmul.mubr.f32.gmra.mrb[0].mxu0 %v2066
  %v2068 = vpop.f32.mrb[0].mxu0
  %v2069 = vadd.f32 %v1788, %v2068
  %v2070 = vpop.f32.mrb[0].mxu0
  %2071 = vmatprep.mubr.f32.mxu0 0.0
  %v2072 = vand.u32 %v1640, 4294901760
  %2073 = vmatmul.mubr.f32.gmra.mrb[0].mxu0 %v2072
  %v2074 = vpop.f32.mrb[0].mxu0
  %v2075 = vadd.f32 %v1798, %v2074
  %v2076 = vpop.f32.mrb[0].mxu0
  %2077 = vmatprep.mubr.f32.mxu0 0.0
  %v2078 = vand.u32 %v1641, 4294901760
  %2079 = vmatmul.mubr.f32.gmra.mrb[0].mxu0 %v2078
  %v2080 = vpop.f32.mrb[0].mxu0
  %v2081 = vadd.f32 %v1808, %v2080
  %v2082 = vpop.f32.mrb[0].mxu0
  %2083 = vmatprep.mubr.f32.mxu0 0.0
  %v2084 = vand.u32 %v1642, 4294901760
  %2085 = vmatmul.mubr.f32.gmra.mrb[0].mxu0 %v2084
  %v2086 = vpop.f32.mrb[0].mxu0
  %v2087 = vadd.f32 %v1818, %v2086
  %v2088 = vpop.f32.mrb[0].mxu0
  %2089 = vmatprep.mubr.f32.mxu0 0.0
  %v2090 = vand.u32 %v1643, 4294901760
  %2091 = vmatmul.mubr.f32.gmra.mrb[0].mxu0 %v2090
  %v2092 = vpop.f32.mrb[0].mxu0
  %v2093 = vadd.f32 %v1828, %v2092
  %v2094 = vpop.f32.mrb[0].mxu0
  %2095 = vmatprep.mubr.f32.mxu0 0.0
  %v2096 = vand.u32 %v1644, 4294901760
  %2097 = vmatmul.mubr.f32.gmra.mrb[0].mxu0 %v2096
  %v2098 = vpop.f32.mrb[0].mxu0
  %v2099 = vadd.f32 %v1838, %v2098
  %v2100 = vpop.f32.mrb[0].mxu0
  %2101 = vmatprep.mubr.f32.mxu0 0.0
  %v2102 = vand.u32 %v1645, 4294901760
  %2103 = vmatmul.mubr.f32.gmra.mrb[0].mxu0 %v2102
  %v2104 = vpop.f32.mrb[0].mxu0
  %v2105 = vadd.f32 %v1848, %v2104
  %v2106 = vpop.f32.mrb[0].mxu0
  %2107 = vmatprep.mubr.f32.mxu0 0.0
  %v2108 = vand.u32 %v1646, 4294901760
  %2109 = vmatmul.mubr.f32.gmra.mrb[0].mxu0 %v2108
  %v2110 = vpop.f32.mrb[0].mxu0
  %v2111 = vadd.f32 %v1858, %v2110
  %v2112 = vpop.f32.mrb[0].mxu0
  %2113 = vmatprep.mubr.f32.mxu0 0.0
  %v2114 = vand.u32 %v1647, 4294901760
  %2115 = vmatmul.mubr.f32.gmra.mrb[0].mxu0 %v2114
  %v2116 = vpop.f32.mrb[0].mxu0
  %v2117 = vadd.f32 %v1868, %v2116
  %v2118 = vpop.f32.mrb[0].mxu0
  %2119 = vmatprep.mubr.f32.mxu0 0.0
  %v2120 = vand.u32 %v1648, 4294901760
  %2121 = vmatmul.mubr.f32.gmra.mrb[0].mxu0 %v2120
  %v2122 = vpop.f32.mrb[0].mxu0
  %v2123 = vadd.f32 %v1878, %v2122
  %v2124 = vpop.f32.mrb[0].mxu0
  %2125 = vmatprep.mubr.f32.mxu0 0.0
  %v2126 = vand.u32 %v1649, 4294901760
  %2127 = vmatmul.mubr.f32.gmra.mrb[0].mxu0 %v2126
  %v2128 = vpop.f32.mrb[0].mxu0
  %v2129 = vadd.f32 %v1888, %v2128
  %v2130 = vpop.f32.mrb[0].mxu0
  %2131 = vdwg.mxu0
  %2132 = vmatprep.subr.mxu0 0.0
  %v2133 = vand.u32 %v84, 4294901760
  %v2134 = vsub.f32 %v84, %v2133
  %2135 = vmatpush1.msra.mxu0 %v2134
  %2136 = vmatprep.subr.mxu0 0.0
  %v2137 = vand.u32 %v85, 4294901760
  %v2138 = vsub.f32 %v85, %v2137
  %2139 = vmatpush1.msra.mxu0 %v2138
  %2140 = vmatprep.subr.mxu0 0.0
  %v2141 = vand.u32 %v86, 4294901760
  %v2142 = vsub.f32 %v86, %v2141
  %2143 = vmatpush1.msra.mxu0 %v2142
  %2144 = vmatprep.subr.mxu0 0.0
  %v2145 = vand.u32 %v87, 4294901760
  %v2146 = vsub.f32 %v87, %v2145
  %2147 = vmatpush1.msra.mxu0 %v2146
  %2148 = vmatprep.subr.mxu0 0.0
  %v2149 = vand.u32 %v88, 4294901760
  %v2150 = vsub.f32 %v88, %v2149
  %2151 = vmatpush1.msra.mxu0 %v2150
  %2152 = vmatprep.subr.mxu0 0.0
  %v2153 = vand.u32 %v89, 4294901760
  %v2154 = vsub.f32 %v89, %v2153
  %2155 = vmatpush1.msra.mxu0 %v2154
  %2156 = vmatprep.subr.mxu0 0.0
  %v2157 = vand.u32 %v90, 4294901760
  %v2158 = vsub.f32 %v90, %v2157
  %2159 = vmatpush1.msra.mxu0 %v2158
  %2160 = vmatprep.subr.mxu0 0.0
  %v2161 = vand.u32 %v91, 4294901760
  %v2162 = vsub.f32 %v91, %v2161
  %2163 = vmatpush1.msra.mxu0 %v2162
  %2164 = vmatprep.subr.mxu0 0.0
  %v2165 = vand.u32 %v92, 4294901760
  %v2166 = vsub.f32 %v92, %v2165
  %2167 = vmatpush1.msra.mxu0 %v2166
  %2168 = vmatprep.subr.mxu0 0.0
  %v2169 = vand.u32 %v93, 4294901760
  %v2170 = vsub.f32 %v93, %v2169
  %2171 = vmatpush1.msra.mxu0 %v2170
  %2172 = vmatprep.subr.mxu0 0.0
  %v2173 = vand.u32 %v94, 4294901760
  %v2174 = vsub.f32 %v94, %v2173
  %2175 = vmatpush1.msra.mxu0 %v2174
  %2176 = vmatprep.subr.mxu0 0.0
  %v2177 = vand.u32 %v95, 4294901760
  %v2178 = vsub.f32 %v95, %v2177
  %2179 = vmatpush1.msra.mxu0 %v2178
  %2180 = vmatprep.subr.mxu0 0.0
  %v2181 = vand.u32 %v96, 4294901760
  %v2182 = vsub.f32 %v96, %v2181
  %2183 = vmatpush1.msra.mxu0 %v2182
  %2184 = vmatprep.subr.mxu0 0.0
  %v2185 = vand.u32 %v97, 4294901760
  %v2186 = vsub.f32 %v97, %v2185
  %2187 = vmatpush1.msra.mxu0 %v2186
  %2188 = vmatprep.subr.mxu0 0.0
  %v2189 = vand.u32 %v98, 4294901760
  %v2190 = vsub.f32 %v98, %v2189
  %2191 = vmatpush1.msra.mxu0 %v2190
  %2192 = vmatprep.subr.mxu0 0.0
  %v2193 = vand.u32 %v99, 4294901760
  %v2194 = vsub.f32 %v99, %v2193
  %2195 = vmatpush1.msra.mxu0 %v2194
  %2196 = vmatprep.subr.mxu0 0.0
  %2197 = vmatpush1.msra.mxu0 0.0
  %2198 = vmatprep.subr.mxu0 0.0
  %2199 = vmatpush1.msra.mxu0 0.0
  %2200 = vmatprep.subr.mxu0 0.0
  %2201 = vmatpush1.msra.mxu0 0.0
  %2202 = vmatprep.subr.mxu0 0.0
  %2203 = vmatpush1.msra.mxu0 0.0
  %2204 = vmatprep.subr.mxu0 0.0
  %2205 = vmatpush1.msra.mxu0 0.0
  %2206 = vmatprep.subr.mxu0 0.0
  %2207 = vmatpush1.msra.mxu0 0.0
  %2208 = vmatprep.subr.mxu0 0.0
  %2209 = vmatpush1.msra.mxu0 0.0
  %2210 = vmatprep.subr.mxu0 0.0
  %2211 = vmatpush1.msra.mxu0 0.0
  %2212 = vmatprep.subr.mxu0 0.0
  %2213 = vmatpush1.msra.mxu0 0.0
  %2214 = vmatprep.subr.mxu0 0.0
  %2215 = vmatpush1.msra.mxu0 0.0
  %2216 = vmatprep.subr.mxu0 0.0
  %2217 = vmatpush1.msra.mxu0 0.0
  %2218 = vmatprep.subr.mxu0 0.0
  %2219 = vmatpush1.msra.mxu0 0.0
  %2220 = vmatprep.subr.mxu0 0.0
  %2221 = vmatpush1.msra.mxu0 0.0
  %2222 = vmatprep.subr.mxu0 0.0
  %2223 = vmatpush1.msra.mxu0 0.0
  %2224 = vmatprep.subr.mxu0 0.0
  %2225 = vmatpush1.msra.mxu0 0.0
  %2226 = vmatprep.subr.mxu0 0.0
  %2227 = vmatpush1.msra.mxu0 0.0
  %2228 = vmatprep.mubr.f32.mxu0 0.0
  %v2229 = vand.u32 %v1634, 4294901760
  %v2230 = vsub.f32 %v1634, %v2229
  %2231 = vmatmul.mubr.f32.gmra.mrb[0].mxu0 %v2230
  %v2232 = vpop.f32.mrb[0].mxu0
  %v2233 = vadd.f32 %v2039, %v2232
  %v2234 = vpop.f32.mrb[0].mxu0
  %2235 = vmatprep.mubr.f32.mxu0 0.0
  %v2236 = vand.u32 %v1635, 4294901760
  %v2237 = vsub.f32 %v1635, %v2236
  %2238 = vmatmul.mubr.f32.gmra.mrb[0].mxu0 %v2237
  %v2239 = vpop.f32.mrb[0].mxu0
  %v2240 = vadd.f32 %v2045, %v2239
  %v2241 = vpop.f32.mrb[0].mxu0
  %2242 = vmatprep.mubr.f32.mxu0 0.0
  %v2243 = vand.u32 %v1636, 4294901760
  %v2244 = vsub.f32 %v1636, %v2243
  %2245 = vmatmul.mubr.f32.gmra.mrb[0].mxu0 %v2244
  %v2246 = vpop.f32.mrb[0].mxu0
  %v2247 = vadd.f32 %v2051, %v2246
  %v2248 = vpop.f32.mrb[0].mxu0
  %2249 = vmatprep.mubr.f32.mxu0 0.0
  %v2250 = vand.u32 %v1637, 4294901760
  %v2251 = vsub.f32 %v1637, %v2250
  %2252 = vmatmul.mubr.f32.gmra.mrb[0].mxu0 %v2251
  %v2253 = vpop.f32.mrb[0].mxu0
  %v2254 = vadd.f32 %v2057, %v2253
  %v2255 = vpop.f32.mrb[0].mxu0
  %2256 = vmatprep.mubr.f32.mxu0 0.0
  %v2257 = vand.u32 %v1638, 4294901760
  %v2258 = vsub.f32 %v1638, %v2257
  %2259 = vmatmul.mubr.f32.gmra.mrb[0].mxu0 %v2258
  %v2260 = vpop.f32.mrb[0].mxu0
  %v2261 = vadd.f32 %v2063, %v2260
  %v2262 = vpop.f32.mrb[0].mxu0
  %2263 = vmatprep.mubr.f32.mxu0 0.0
  %v2264 = vand.u32 %v1639, 4294901760
  %v2265 = vsub.f32 %v1639, %v2264
  %2266 = vmatmul.mubr.f32.gmra.mrb[0].mxu0 %v2265
  %v2267 = vpop.f32.mrb[0].mxu0
  %v2268 = vadd.f32 %v2069, %v2267
  %v2269 = vpop.f32.mrb[0].mxu0
  %2270 = vmatprep.mubr.f32.mxu0 0.0
  %v2271 = vand.u32 %v1640, 4294901760
  %v2272 = vsub.f32 %v1640, %v2271
  %2273 = vmatmul.mubr.f32.gmra.mrb[0].mxu0 %v2272
  %v2274 = vpop.f32.mrb[0].mxu0
  %v2275 = vadd.f32 %v2075, %v2274
  %v2276 = vpop.f32.mrb[0].mxu0
  %2277 = vmatprep.mubr.f32.mxu0 0.0
  %v2278 = vand.u32 %v1641, 4294901760
  %v2279 = vsub.f32 %v1641, %v2278
  %2280 = vmatmul.mubr.f32.gmra.mrb[0].mxu0 %v2279
  %v2281 = vpop.f32.mrb[0].mxu0
  %v2282 = vadd.f32 %v2081, %v2281
  %v2283 = vpop.f32.mrb[0].mxu0
  %2284 = vmatprep.mubr.f32.mxu0 0.0
  %v2285 = vand.u32 %v1642, 4294901760
  %v2286 = vsub.f32 %v1642, %v2285
  %2287 = vmatmul.mubr.f32.gmra.mrb[0].mxu0 %v2286
  %v2288 = vpop.f32.mrb[0].mxu0
  %v2289 = vadd.f32 %v2087, %v2288
  %v2290 = vpop.f32.mrb[0].mxu0
  %2291 = vmatprep.mubr.f32.mxu0 0.0
  %v2292 = vand.u32 %v1643, 4294901760
  %v2293 = vsub.f32 %v1643, %v2292
  %2294 = vmatmul.mubr.f32.gmra.mrb[0].mxu0 %v2293
  %v2295 = vpop.f32.mrb[0].mxu0
  %v2296 = vadd.f32 %v2093, %v2295
  %v2297 = vpop.f32.mrb[0].mxu0
  %2298 = vmatprep.mubr.f32.mxu0 0.0
  %v2299 = vand.u32 %v1644, 4294901760
  %v2300 = vsub.f32 %v1644, %v2299
  %2301 = vmatmul.mubr.f32.gmra.mrb[0].mxu0 %v2300
  %v2302 = vpop.f32.mrb[0].mxu0
  %v2303 = vadd.f32 %v2099, %v2302
  %v2304 = vpop.f32.mrb[0].mxu0
  %2305 = vmatprep.mubr.f32.mxu0 0.0
  %v2306 = vand.u32 %v1645, 4294901760
  %v2307 = vsub.f32 %v1645, %v2306
  %2308 = vmatmul.mubr.f32.gmra.mrb[0].mxu0 %v2307
  %v2309 = vpop.f32.mrb[0].mxu0
  %v2310 = vadd.f32 %v2105, %v2309
  %v2311 = vpop.f32.mrb[0].mxu0
  %2312 = vmatprep.mubr.f32.mxu0 0.0
  %v2313 = vand.u32 %v1646, 4294901760
  %v2314 = vsub.f32 %v1646, %v2313
  %2315 = vmatmul.mubr.f32.gmra.mrb[0].mxu0 %v2314
  %v2316 = vpop.f32.mrb[0].mxu0
  %v2317 = vadd.f32 %v2111, %v2316
  %v2318 = vpop.f32.mrb[0].mxu0
  %2319 = vmatprep.mubr.f32.mxu0 0.0
  %v2320 = vand.u32 %v1647, 4294901760
  %v2321 = vsub.f32 %v1647, %v2320
  %2322 = vmatmul.mubr.f32.gmra.mrb[0].mxu0 %v2321
  %v2323 = vpop.f32.mrb[0].mxu0
  %v2324 = vadd.f32 %v2117, %v2323
  %v2325 = vpop.f32.mrb[0].mxu0
  %2326 = vmatprep.mubr.f32.mxu0 0.0
  %v2327 = vand.u32 %v1648, 4294901760
  %v2328 = vsub.f32 %v1648, %v2327
  %2329 = vmatmul.mubr.f32.gmra.mrb[0].mxu0 %v2328
  %v2330 = vpop.f32.mrb[0].mxu0
  %v2331 = vadd.f32 %v2123, %v2330
  %v2332 = vpop.f32.mrb[0].mxu0
  %2333 = vmatprep.mubr.f32.mxu0 0.0
  %v2334 = vand.u32 %v1649, 4294901760
  %v2335 = vsub.f32 %v1649, %v2334
  %2336 = vmatmul.mubr.f32.gmra.mrb[0].mxu0 %v2335
  %v2337 = vpop.f32.mrb[0].mxu0
  %v2338 = vadd.f32 %v2129, %v2337
  %v2339 = vpop.f32.mrb[0].mxu0
  %2340 = vdwg.mxu0
  %2341 = vmatprep.subr.mxu0 0.0
  %v2342 = vand.u32 %v84, 4294901760
  %2343 = vmatpush1.msra.mxu0 %v2342
  %2344 = vmatprep.subr.mxu0 0.0
  %v2345 = vand.u32 %v85, 4294901760
  %2346 = vmatpush1.msra.mxu0 %v2345
  %2347 = vmatprep.subr.mxu0 0.0
  %v2348 = vand.u32 %v86, 4294901760
  %2349 = vmatpush1.msra.mxu0 %v2348
  %2350 = vmatprep.subr.mxu0 0.0
  %v2351 = vand.u32 %v87, 4294901760
  %2352 = vmatpush1.msra.mxu0 %v2351
  %2353 = vmatprep.subr.mxu0 0.0
  %v2354 = vand.u32 %v88, 4294901760
  %2355 = vmatpush1.msra.mxu0 %v2354
  %2356 = vmatprep.subr.mxu0 0.0
  %v2357 = vand.u32 %v89, 4294901760
  %2358 = vmatpush1.msra.mxu0 %v2357
  %2359 = vmatprep.subr.mxu0 0.0
  %v2360 = vand.u32 %v90, 4294901760
  %2361 = vmatpush1.msra.mxu0 %v2360
  %2362 = vmatprep.subr.mxu0 0.0
  %v2363 = vand.u32 %v91, 4294901760
  %2364 = vmatpush1.msra.mxu0 %v2363
  %2365 = vmatprep.subr.mxu0 0.0
  %v2366 = vand.u32 %v92, 4294901760
  %2367 = vmatpush1.msra.mxu0 %v2366
  %2368 = vmatprep.subr.mxu0 0.0
  %v2369 = vand.u32 %v93, 4294901760
  %2370 = vmatpush1.msra.mxu0 %v2369
  %2371 = vmatprep.subr.mxu0 0.0
  %v2372 = vand.u32 %v94, 4294901760
  %2373 = vmatpush1.msra.mxu0 %v2372
  %2374 = vmatprep.subr.mxu0 0.0
  %v2375 = vand.u32 %v95, 4294901760
  %2376 = vmatpush1.msra.mxu0 %v2375
  %2377 = vmatprep.subr.mxu0 0.0
  %v2378 = vand.u32 %v96, 4294901760
  %2379 = vmatpush1.msra.mxu0 %v2378
  %2380 = vmatprep.subr.mxu0 0.0
  %v2381 = vand.u32 %v97, 4294901760
  %2382 = vmatpush1.msra.mxu0 %v2381
  %2383 = vmatprep.subr.mxu0 0.0
  %v2384 = vand.u32 %v98, 4294901760
  %2385 = vmatpush1.msra.mxu0 %v2384
  %2386 = vmatprep.subr.mxu0 0.0
  %v2387 = vand.u32 %v99, 4294901760
  %2388 = vmatpush1.msra.mxu0 %v2387
  %2389 = vmatprep.subr.mxu0 0.0
  %2390 = vmatpush1.msra.mxu0 0.0
  %2391 = vmatprep.subr.mxu0 0.0
  %2392 = vmatpush1.msra.mxu0 0.0
  %2393 = vmatprep.subr.mxu0 0.0
  %2394 = vmatpush1.msra.mxu0 0.0
  %2395 = vmatprep.subr.mxu0 0.0
  %2396 = vmatpush1.msra.mxu0 0.0
  %2397 = vmatprep.subr.mxu0 0.0
  %2398 = vmatpush1.msra.mxu0 0.0
  %2399 = vmatprep.subr.mxu0 0.0
  %2400 = vmatpush1.msra.mxu0 0.0
  %2401 = vmatprep.subr.mxu0 0.0
  %2402 = vmatpush1.msra.mxu0 0.0
  %2403 = vmatprep.subr.mxu0 0.0
  %2404 = vmatpush1.msra.mxu0 0.0
  %2405 = vmatprep.subr.mxu0 0.0
  %2406 = vmatpush1.msra.mxu0 0.0
  %2407 = vmatprep.subr.mxu0 0.0
  %2408 = vmatpush1.msra.mxu0 0.0
  %2409 = vmatprep.subr.mxu0 0.0
  %2410 = vmatpush1.msra.mxu0 0.0
  %2411 = vmatprep.subr.mxu0 0.0
  %2412 = vmatpush1.msra.mxu0 0.0
  %2413 = vmatprep.subr.mxu0 0.0
  %2414 = vmatpush1.msra.mxu0 0.0
  %2415 = vmatprep.subr.mxu0 0.0
  %2416 = vmatpush1.msra.mxu0 0.0
  %2417 = vmatprep.subr.mxu0 0.0
  %2418 = vmatpush1.msra.mxu0 0.0
  %2419 = vmatprep.subr.mxu0 0.0
  %2420 = vmatpush1.msra.mxu0 0.0
  %2421 = vmatprep.mubr.f32.mxu0 0.0
  %v2422 = vand.u32 %v1634, 4294901760
  %v2423 = vsub.f32 %v1634, %v2422
  %v2424 = vand.u32 %v2423, 4294901760
  %2425 = vmatmul.mubr.f32.gmra.mrb[0].mxu0 %v2424
  %v2426 = vpop.f32.mrb[0].mxu0
  %v2427 = vadd.f32 %v2233, %v2426
  %v2428 = vpop.f32.mrb[0].mxu0
  %2429 = vmatprep.mubr.f32.mxu0 0.0
  %v2430 = vand.u32 %v1635, 4294901760
  %v2431 = vsub.f32 %v1635, %v2430
  %v2432 = vand.u32 %v2431, 4294901760
  %2433 = vmatmul.mubr.f32.gmra.mrb[0].mxu0 %v2432
  %v2434 = vpop.f32.mrb[0].mxu0
  %v2435 = vadd.f32 %v2240, %v2434
  %v2436 = vpop.f32.mrb[0].mxu0
  %2437 = vmatprep.mubr.f32.mxu0 0.0
  %v2438 = vand.u32 %v1636, 4294901760
  %v2439 = vsub.f32 %v1636, %v2438
  %v2440 = vand.u32 %v2439, 4294901760
  %2441 = vmatmul.mubr.f32.gmra.mrb[0].mxu0 %v2440
  %v2442 = vpop.f32.mrb[0].mxu0
  %v2443 = vadd.f32 %v2247, %v2442
  %v2444 = vpop.f32.mrb[0].mxu0
  %2445 = vmatprep.mubr.f32.mxu0 0.0
  %v2446 = vand.u32 %v1637, 4294901760
  %v2447 = vsub.f32 %v1637, %v2446
  %v2448 = vand.u32 %v2447, 4294901760
  %2449 = vmatmul.mubr.f32.gmra.mrb[0].mxu0 %v2448
  %v2450 = vpop.f32.mrb[0].mxu0
  %v2451 = vadd.f32 %v2254, %v2450
  %v2452 = vpop.f32.mrb[0].mxu0
  %2453 = vmatprep.mubr.f32.mxu0 0.0
  %v2454 = vand.u32 %v1638, 4294901760
  %v2455 = vsub.f32 %v1638, %v2454
  %v2456 = vand.u32 %v2455, 4294901760
  %2457 = vmatmul.mubr.f32.gmra.mrb[0].mxu0 %v2456
  %v2458 = vpop.f32.mrb[0].mxu0
  %v2459 = vadd.f32 %v2261, %v2458
  %v2460 = vpop.f32.mrb[0].mxu0
  %2461 = vmatprep.mubr.f32.mxu0 0.0
  %v2462 = vand.u32 %v1639, 4294901760
  %v2463 = vsub.f32 %v1639, %v2462
  %v2464 = vand.u32 %v2463, 4294901760
  %2465 = vmatmul.mubr.f32.gmra.mrb[0].mxu0 %v2464
  %v2466 = vpop.f32.mrb[0].mxu0
  %v2467 = vadd.f32 %v2268, %v2466
  %v2468 = vpop.f32.mrb[0].mxu0
  %2469 = vmatprep.mubr.f32.mxu0 0.0
  %v2470 = vand.u32 %v1640, 4294901760
  %v2471 = vsub.f32 %v1640, %v2470
  %v2472 = vand.u32 %v2471, 4294901760
  %2473 = vmatmul.mubr.f32.gmra.mrb[0].mxu0 %v2472
  %v2474 = vpop.f32.mrb[0].mxu0
  %v2475 = vadd.f32 %v2275, %v2474
  %v2476 = vpop.f32.mrb[0].mxu0
  %2477 = vmatprep.mubr.f32.mxu0 0.0
  %v2478 = vand.u32 %v1641, 4294901760
  %v2479 = vsub.f32 %v1641, %v2478
  %v2480 = vand.u32 %v2479, 4294901760
  %2481 = vmatmul.mubr.f32.gmra.mrb[0].mxu0 %v2480
  %v2482 = vpop.f32.mrb[0].mxu0
  %v2483 = vadd.f32 %v2282, %v2482
  %v2484 = vpop.f32.mrb[0].mxu0
  %2485 = vmatprep.mubr.f32.mxu0 0.0
  %v2486 = vand.u32 %v1642, 4294901760
  %v2487 = vsub.f32 %v1642, %v2486
  %v2488 = vand.u32 %v2487, 4294901760
  %2489 = vmatmul.mubr.f32.gmra.mrb[0].mxu0 %v2488
  %v2490 = vpop.f32.mrb[0].mxu0
  %v2491 = vadd.f32 %v2289, %v2490
  %v2492 = vpop.f32.mrb[0].mxu0
  %2493 = vmatprep.mubr.f32.mxu0 0.0
  %v2494 = vand.u32 %v1643, 4294901760
  %v2495 = vsub.f32 %v1643, %v2494
  %v2496 = vand.u32 %v2495, 4294901760
  %2497 = vmatmul.mubr.f32.gmra.mrb[0].mxu0 %v2496
  %v2498 = vpop.f32.mrb[0].mxu0
  %v2499 = vadd.f32 %v2296, %v2498
  %v2500 = vpop.f32.mrb[0].mxu0
  %2501 = vmatprep.mubr.f32.mxu0 0.0
  %v2502 = vand.u32 %v1644, 4294901760
  %v2503 = vsub.f32 %v1644, %v2502
  %v2504 = vand.u32 %v2503, 4294901760
  %2505 = vmatmul.mubr.f32.gmra.mrb[0].mxu0 %v2504
  %v2506 = vpop.f32.mrb[0].mxu0
  %v2507 = vadd.f32 %v2303, %v2506
  %v2508 = vpop.f32.mrb[0].mxu0
  %2509 = vmatprep.mubr.f32.mxu0 0.0
  %v2510 = vand.u32 %v1645, 4294901760
  %v2511 = vsub.f32 %v1645, %v2510
  %v2512 = vand.u32 %v2511, 4294901760
  %2513 = vmatmul.mubr.f32.gmra.mrb[0].mxu0 %v2512
  %v2514 = vpop.f32.mrb[0].mxu0
  %v2515 = vadd.f32 %v2310, %v2514
  %v2516 = vpop.f32.mrb[0].mxu0
  %2517 = vmatprep.mubr.f32.mxu0 0.0
  %v2518 = vand.u32 %v1646, 4294901760
  %v2519 = vsub.f32 %v1646, %v2518
  %v2520 = vand.u32 %v2519, 4294901760
  %2521 = vmatmul.mubr.f32.gmra.mrb[0].mxu0 %v2520
  %v2522 = vpop.f32.mrb[0].mxu0
  %v2523 = vadd.f32 %v2317, %v2522
  %v2524 = vpop.f32.mrb[0].mxu0
  %2525 = vmatprep.mubr.f32.mxu0 0.0
  %v2526 = vand.u32 %v1647, 4294901760
  %v2527 = vsub.f32 %v1647, %v2526
  %v2528 = vand.u32 %v2527, 4294901760
  %2529 = vmatmul.mubr.f32.gmra.mrb[0].mxu0 %v2528
  %v2530 = vpop.f32.mrb[0].mxu0
  %v2531 = vadd.f32 %v2324, %v2530
  %v2532 = vpop.f32.mrb[0].mxu0
  %2533 = vmatprep.mubr.f32.mxu0 0.0
  %v2534 = vand.u32 %v1648, 4294901760
  %v2535 = vsub.f32 %v1648, %v2534
  %v2536 = vand.u32 %v2535, 4294901760
  %2537 = vmatmul.mubr.f32.gmra.mrb[0].mxu0 %v2536
  %v2538 = vpop.f32.mrb[0].mxu0
  %v2539 = vadd.f32 %v2331, %v2538
  %v2540 = vpop.f32.mrb[0].mxu0
  %2541 = vmatprep.mubr.f32.mxu0 0.0
  %v2542 = vand.u32 %v1649, 4294901760
  %v2543 = vsub.f32 %v1649, %v2542
  %v2544 = vand.u32 %v2543, 4294901760
  %2545 = vmatmul.mubr.f32.gmra.mrb[0].mxu0 %v2544
  %v2546 = vpop.f32.mrb[0].mxu0
  %v2547 = vadd.f32 %v2338, %v2546
  %v2548 = vpop.f32.mrb[0].mxu0
  %2549 = vdwg.mxu0
  %2550 = vmatprep.subr.mxu0 0.0
  %v2551 = vand.u32 %v84, 4294901760
  %v2552 = vsub.f32 %v84, %v2551
  %v2553 = vand.u32 %v2552, 4294901760
  %2554 = vmatpush1.msra.mxu0 %v2553
  %2555 = vmatprep.subr.mxu0 0.0
  %v2556 = vand.u32 %v85, 4294901760
  %v2557 = vsub.f32 %v85, %v2556
  %v2558 = vand.u32 %v2557, 4294901760
  %2559 = vmatpush1.msra.mxu0 %v2558
  %2560 = vmatprep.subr.mxu0 0.0
  %v2561 = vand.u32 %v86, 4294901760
  %v2562 = vsub.f32 %v86, %v2561
  %v2563 = vand.u32 %v2562, 4294901760
  %2564 = vmatpush1.msra.mxu0 %v2563
  %2565 = vmatprep.subr.mxu0 0.0
  %v2566 = vand.u32 %v87, 4294901760
  %v2567 = vsub.f32 %v87, %v2566
  %v2568 = vand.u32 %v2567, 4294901760
  %2569 = vmatpush1.msra.mxu0 %v2568
  %2570 = vmatprep.subr.mxu0 0.0
  %v2571 = vand.u32 %v88, 4294901760
  %v2572 = vsub.f32 %v88, %v2571
  %v2573 = vand.u32 %v2572, 4294901760
  %2574 = vmatpush1.msra.mxu0 %v2573
  %2575 = vmatprep.subr.mxu0 0.0
  %v2576 = vand.u32 %v89, 4294901760
  %v2577 = vsub.f32 %v89, %v2576
  %v2578 = vand.u32 %v2577, 4294901760
  %2579 = vmatpush1.msra.mxu0 %v2578
  %2580 = vmatprep.subr.mxu0 0.0
  %v2581 = vand.u32 %v90, 4294901760
  %v2582 = vsub.f32 %v90, %v2581
  %v2583 = vand.u32 %v2582, 4294901760
  %2584 = vmatpush1.msra.mxu0 %v2583
  %2585 = vmatprep.subr.mxu0 0.0
  %v2586 = vand.u32 %v91, 4294901760
  %v2587 = vsub.f32 %v91, %v2586
  %v2588 = vand.u32 %v2587, 4294901760
  %2589 = vmatpush1.msra.mxu0 %v2588
  %2590 = vmatprep.subr.mxu0 0.0
  %v2591 = vand.u32 %v92, 4294901760
  %v2592 = vsub.f32 %v92, %v2591
  %v2593 = vand.u32 %v2592, 4294901760
  %2594 = vmatpush1.msra.mxu0 %v2593
  %2595 = vmatprep.subr.mxu0 0.0
  %v2596 = vand.u32 %v93, 4294901760
  %v2597 = vsub.f32 %v93, %v2596
  %v2598 = vand.u32 %v2597, 4294901760
  %2599 = vmatpush1.msra.mxu0 %v2598
  %2600 = vmatprep.subr.mxu0 0.0
  %v2601 = vand.u32 %v94, 4294901760
  %v2602 = vsub.f32 %v94, %v2601
  %v2603 = vand.u32 %v2602, 4294901760
  %2604 = vmatpush1.msra.mxu0 %v2603
  %2605 = vmatprep.subr.mxu0 0.0
  %v2606 = vand.u32 %v95, 4294901760
  %v2607 = vsub.f32 %v95, %v2606
  %v2608 = vand.u32 %v2607, 4294901760
  %2609 = vmatpush1.msra.mxu0 %v2608
  %2610 = vmatprep.subr.mxu0 0.0
  %v2611 = vand.u32 %v96, 4294901760
  %v2612 = vsub.f32 %v96, %v2611
  %v2613 = vand.u32 %v2612, 4294901760
  %2614 = vmatpush1.msra.mxu0 %v2613
  %2615 = vmatprep.subr.mxu0 0.0
  %v2616 = vand.u32 %v97, 4294901760
  %v2617 = vsub.f32 %v97, %v2616
  %v2618 = vand.u32 %v2617, 4294901760
  %2619 = vmatpush1.msra.mxu0 %v2618
  %2620 = vmatprep.subr.mxu0 0.0
  %v2621 = vand.u32 %v98, 4294901760
  %v2622 = vsub.f32 %v98, %v2621
  %v2623 = vand.u32 %v2622, 4294901760
  %2624 = vmatpush1.msra.mxu0 %v2623
  %2625 = vmatprep.subr.mxu0 0.0
  %v2626 = vand.u32 %v99, 4294901760
  %v2627 = vsub.f32 %v99, %v2626
  %v2628 = vand.u32 %v2627, 4294901760
  %2629 = vmatpush1.msra.mxu0 %v2628
  %2630 = vmatprep.subr.mxu0 0.0
  %2631 = vmatpush1.msra.mxu0 0.0
  %2632 = vmatprep.subr.mxu0 0.0
  %2633 = vmatpush1.msra.mxu0 0.0
  %2634 = vmatprep.subr.mxu0 0.0
  %2635 = vmatpush1.msra.mxu0 0.0
  %2636 = vmatprep.subr.mxu0 0.0
  %2637 = vmatpush1.msra.mxu0 0.0
  %2638 = vmatprep.subr.mxu0 0.0
  %2639 = vmatpush1.msra.mxu0 0.0
  %2640 = vmatprep.subr.mxu0 0.0
  %2641 = vmatpush1.msra.mxu0 0.0
  %2642 = vmatprep.subr.mxu0 0.0
  %2643 = vmatpush1.msra.mxu0 0.0
  %2644 = vmatprep.subr.mxu0 0.0
  %2645 = vmatpush1.msra.mxu0 0.0
  %2646 = vmatprep.subr.mxu0 0.0
  %2647 = vmatpush1.msra.mxu0 0.0
  %2648 = vmatprep.subr.mxu0 0.0
  %2649 = vmatpush1.msra.mxu0 0.0
  %2650 = vmatprep.subr.mxu0 0.0
  %2651 = vmatpush1.msra.mxu0 0.0
  %2652 = vmatprep.subr.mxu0 0.0
  %2653 = vmatpush1.msra.mxu0 0.0
  %2654 = vmatprep.subr.mxu0 0.0
  %2655 = vmatpush1.msra.mxu0 0.0
  %2656 = vmatprep.subr.mxu0 0.0
  %2657 = vmatpush1.msra.mxu0 0.0
  %2658 = vmatprep.subr.mxu0 0.0
  %2659 = vmatpush1.msra.mxu0 0.0
  %2660 = vmatprep.subr.mxu0 0.0
  %2661 = vmatpush1.msra.mxu0 0.0
  %2662 = vmatprep.mubr.f32.mxu0 0.0
  %v2663 = vand.u32 %v1634, 4294901760
  %2664 = vmatmul.mubr.f32.gmra.mrb[0].mxu0 %v2663
  %v2665 = vpop.f32.mrb[0].mxu0
  %v2666 = vadd.f32 %v2427, %v2665
  %v2667 = vpop.f32.mrb[0].mxu0
  %2668 = vmatprep.mubr.f32.mxu0 0.0
  %v2669 = vand.u32 %v1635, 4294901760
  %2670 = vmatmul.mubr.f32.gmra.mrb[0].mxu0 %v2669
  %v2671 = vpop.f32.mrb[0].mxu0
  %v2672 = vadd.f32 %v2435, %v2671
  %v2673 = vpop.f32.mrb[0].mxu0
  %2674 = vmatprep.mubr.f32.mxu0 0.0
  %v2675 = vand.u32 %v1636, 4294901760
  %2676 = vmatmul.mubr.f32.gmra.mrb[0].mxu0 %v2675
  %v2677 = vpop.f32.mrb[0].mxu0
  %v2678 = vadd.f32 %v2443, %v2677
  %v2679 = vpop.f32.mrb[0].mxu0
  %2680 = vmatprep.mubr.f32.mxu0 0.0
  %v2681 = vand.u32 %v1637, 4294901760
  %2682 = vmatmul.mubr.f32.gmra.mrb[0].mxu0 %v2681
  %v2683 = vpop.f32.mrb[0].mxu0
  %v2684 = vadd.f32 %v2451, %v2683
  %v2685 = vpop.f32.mrb[0].mxu0
  %2686 = vmatprep.mubr.f32.mxu0 0.0
  %v2687 = vand.u32 %v1638, 4294901760
  %2688 = vmatmul.mubr.f32.gmra.mrb[0].mxu0 %v2687
  %v2689 = vpop.f32.mrb[0].mxu0
  %v2690 = vadd.f32 %v2459, %v2689
  %v2691 = vpop.f32.mrb[0].mxu0
  %2692 = vmatprep.mubr.f32.mxu0 0.0
  %v2693 = vand.u32 %v1639, 4294901760
  %2694 = vmatmul.mubr.f32.gmra.mrb[0].mxu0 %v2693
  %v2695 = vpop.f32.mrb[0].mxu0
  %v2696 = vadd.f32 %v2467, %v2695
  %v2697 = vpop.f32.mrb[0].mxu0
  %2698 = vmatprep.mubr.f32.mxu0 0.0
  %v2699 = vand.u32 %v1640, 4294901760
  %2700 = vmatmul.mubr.f32.gmra.mrb[0].mxu0 %v2699
  %v2701 = vpop.f32.mrb[0].mxu0
  %v2702 = vadd.f32 %v2475, %v2701
  %v2703 = vpop.f32.mrb[0].mxu0
  %2704 = vmatprep.mubr.f32.mxu0 0.0
  %v2705 = vand.u32 %v1641, 4294901760
  %2706 = vmatmul.mubr.f32.gmra.mrb[0].mxu0 %v2705
  %v2707 = vpop.f32.mrb[0].mxu0
  %v2708 = vadd.f32 %v2483, %v2707
  %v2709 = vpop.f32.mrb[0].mxu0
  %2710 = vmatprep.mubr.f32.mxu0 0.0
  %v2711 = vand.u32 %v1642, 4294901760
  %2712 = vmatmul.mubr.f32.gmra.mrb[0].mxu0 %v2711
  %v2713 = vpop.f32.mrb[0].mxu0
  %v2714 = vadd.f32 %v2491, %v2713
  %v2715 = vpop.f32.mrb[0].mxu0
  %2716 = vmatprep.mubr.f32.mxu0 0.0
  %v2717 = vand.u32 %v1643, 4294901760
  %2718 = vmatmul.mubr.f32.gmra.mrb[0].mxu0 %v2717
  %v2719 = vpop.f32.mrb[0].mxu0
  %v2720 = vadd.f32 %v2499, %v2719
  %v2721 = vpop.f32.mrb[0].mxu0
  %2722 = vmatprep.mubr.f32.mxu0 0.0
  %v2723 = vand.u32 %v1644, 4294901760
  %2724 = vmatmul.mubr.f32.gmra.mrb[0].mxu0 %v2723
  %v2725 = vpop.f32.mrb[0].mxu0
  %v2726 = vadd.f32 %v2507, %v2725
  %v2727 = vpop.f32.mrb[0].mxu0
  %2728 = vmatprep.mubr.f32.mxu0 0.0
  %v2729 = vand.u32 %v1645, 4294901760
  %2730 = vmatmul.mubr.f32.gmra.mrb[0].mxu0 %v2729
  %v2731 = vpop.f32.mrb[0].mxu0
  %v2732 = vadd.f32 %v2515, %v2731
  %v2733 = vpop.f32.mrb[0].mxu0
  %2734 = vmatprep.mubr.f32.mxu0 0.0
  %v2735 = vand.u32 %v1646, 4294901760
  %2736 = vmatmul.mubr.f32.gmra.mrb[0].mxu0 %v2735
  %v2737 = vpop.f32.mrb[0].mxu0
  %v2738 = vadd.f32 %v2523, %v2737
  %v2739 = vpop.f32.mrb[0].mxu0
  %2740 = vmatprep.mubr.f32.mxu0 0.0
  %v2741 = vand.u32 %v1647, 4294901760
  %2742 = vmatmul.mubr.f32.gmra.mrb[0].mxu0 %v2741
  %v2743 = vpop.f32.mrb[0].mxu0
  %v2744 = vadd.f32 %v2531, %v2743
  %v2745 = vpop.f32.mrb[0].mxu0
  %2746 = vmatprep.mubr.f32.mxu0 0.0
  %v2747 = vand.u32 %v1648, 4294901760
  %2748 = vmatmul.mubr.f32.gmra.mrb[0].mxu0 %v2747
  %v2749 = vpop.f32.mrb[0].mxu0
  %v2750 = vadd.f32 %v2539, %v2749
  %v2751 = vpop.f32.mrb[0].mxu0
  %2752 = vmatprep.mubr.f32.mxu0 0.0
  %v2753 = vand.u32 %v1649, 4294901760
  %2754 = vmatmul.mubr.f32.gmra.mrb[0].mxu0 %v2753
  %v2755 = vpop.f32.mrb[0].mxu0
  %v2756 = vadd.f32 %v2547, %v2755
  %v2757 = vpop.f32.mrb[0].mxu0
  %2758 = vdwg.mxu0
  %2759 = vmatprep.subr.mxu0 0.0
  %v2760 = vand.u32 %v84, 4294901760
  %2761 = vmatpush1.msra.mxu0 %v2760
  %2762 = vmatprep.subr.mxu0 0.0
  %v2763 = vand.u32 %v85, 4294901760
  %2764 = vmatpush1.msra.mxu0 %v2763
  %2765 = vmatprep.subr.mxu0 0.0
  %v2766 = vand.u32 %v86, 4294901760
  %2767 = vmatpush1.msra.mxu0 %v2766
  %2768 = vmatprep.subr.mxu0 0.0
  %v2769 = vand.u32 %v87, 4294901760
  %2770 = vmatpush1.msra.mxu0 %v2769
  %2771 = vmatprep.subr.mxu0 0.0
  %v2772 = vand.u32 %v88, 4294901760
  %2773 = vmatpush1.msra.mxu0 %v2772
  %2774 = vmatprep.subr.mxu0 0.0
  %v2775 = vand.u32 %v89, 4294901760
  %2776 = vmatpush1.msra.mxu0 %v2775
  %2777 = vmatprep.subr.mxu0 0.0
  %v2778 = vand.u32 %v90, 4294901760
  %2779 = vmatpush1.msra.mxu0 %v2778
  %2780 = vmatprep.subr.mxu0 0.0
  %v2781 = vand.u32 %v91, 4294901760
  %2782 = vmatpush1.msra.mxu0 %v2781
  %2783 = vmatprep.subr.mxu0 0.0
  %v2784 = vand.u32 %v92, 4294901760
  %2785 = vmatpush1.msra.mxu0 %v2784
  %2786 = vmatprep.subr.mxu0 0.0
  %v2787 = vand.u32 %v93, 4294901760
  %2788 = vmatpush1.msra.mxu0 %v2787
  %2789 = vmatprep.subr.mxu0 0.0
  %v2790 = vand.u32 %v94, 4294901760
  %2791 = vmatpush1.msra.mxu0 %v2790
  %2792 = vmatprep.subr.mxu0 0.0
  %v2793 = vand.u32 %v95, 4294901760
  %2794 = vmatpush1.msra.mxu0 %v2793
  %2795 = vmatprep.subr.mxu0 0.0
  %v2796 = vand.u32 %v96, 4294901760
  %2797 = vmatpush1.msra.mxu0 %v2796
  %2798 = vmatprep.subr.mxu0 0.0
  %v2799 = vand.u32 %v97, 4294901760
  %2800 = vmatpush1.msra.mxu0 %v2799
  %2801 = vmatprep.subr.mxu0 0.0
  %v2802 = vand.u32 %v98, 4294901760
  %2803 = vmatpush1.msra.mxu0 %v2802
  %2804 = vmatprep.subr.mxu0 0.0
  %v2805 = vand.u32 %v99, 4294901760
  %2806 = vmatpush1.msra.mxu0 %v2805
  %2807 = vmatprep.subr.mxu0 0.0
  %2808 = vmatpush1.msra.mxu0 0.0
  %2809 = vmatprep.subr.mxu0 0.0
  %2810 = vmatpush1.msra.mxu0 0.0
  %2811 = vmatprep.subr.mxu0 0.0
  %2812 = vmatpush1.msra.mxu0 0.0
  %2813 = vmatprep.subr.mxu0 0.0
  %2814 = vmatpush1.msra.mxu0 0.0
  %2815 = vmatprep.subr.mxu0 0.0
  %2816 = vmatpush1.msra.mxu0 0.0
  %2817 = vmatprep.subr.mxu0 0.0
  %2818 = vmatpush1.msra.mxu0 0.0
  %2819 = vmatprep.subr.mxu0 0.0
  %2820 = vmatpush1.msra.mxu0 0.0
  %2821 = vmatprep.subr.mxu0 0.0
  %2822 = vmatpush1.msra.mxu0 0.0
  %2823 = vmatprep.subr.mxu0 0.0
  %2824 = vmatpush1.msra.mxu0 0.0
  %2825 = vmatprep.subr.mxu0 0.0
  %2826 = vmatpush1.msra.mxu0 0.0
  %2827 = vmatprep.subr.mxu0 0.0
  %2828 = vmatpush1.msra.mxu0 0.0
  %2829 = vmatprep.subr.mxu0 0.0
  %2830 = vmatpush1.msra.mxu0 0.0
  %2831 = vmatprep.subr.mxu0 0.0
  %2832 = vmatpush1.msra.mxu0 0.0
  %2833 = vmatprep.subr.mxu0 0.0
  %2834 = vmatpush1.msra.mxu0 0.0
  %2835 = vmatprep.subr.mxu0 0.0
  %2836 = vmatpush1.msra.mxu0 0.0
  %2837 = vmatprep.subr.mxu0 0.0
  %2838 = vmatpush1.msra.mxu0 0.0
  %2839 = vmatprep.mubr.f32.mxu0 0.0
  %v2840 = vand.u32 %v1634, 4294901760
  %2841 = vmatmul.mubr.f32.gmra.mrb[0].mxu0 %v2840
  %v2842 = vpop.f32.mrb[0].mxu0
  %v2843 = vadd.f32 %v2666, %v2842
  %v2844 = vpop.f32.mrb[0].mxu0
  %2845 = vmatprep.mubr.f32.mxu0 0.0
  %v2846 = vand.u32 %v1635, 4294901760
  %2847 = vmatmul.mubr.f32.gmra.mrb[0].mxu0 %v2846
  %v2848 = vpop.f32.mrb[0].mxu0
  %v2849 = vadd.f32 %v2672, %v2848
  %v2850 = vpop.f32.mrb[0].mxu0
  %2851 = vmatprep.mubr.f32.mxu0 0.0
  %v2852 = vand.u32 %v1636, 4294901760
  %2853 = vmatmul.mubr.f32.gmra.mrb[0].mxu0 %v2852
  %v2854 = vpop.f32.mrb[0].mxu0
  %v2855 = vadd.f32 %v2678, %v2854
  %v2856 = vpop.f32.mrb[0].mxu0
  %2857 = vmatprep.mubr.f32.mxu0 0.0
  %v2858 = vand.u32 %v1637, 4294901760
  %2859 = vmatmul.mubr.f32.gmra.mrb[0].mxu0 %v2858
  %v2860 = vpop.f32.mrb[0].mxu0
  %v2861 = vadd.f32 %v2684, %v2860
  %v2862 = vpop.f32.mrb[0].mxu0
  %2863 = vmatprep.mubr.f32.mxu0 0.0
  %v2864 = vand.u32 %v1638, 4294901760
  %2865 = vmatmul.mubr.f32.gmra.mrb[0].mxu0 %v2864
  %v2866 = vpop.f32.mrb[0].mxu0
  %v2867 = vadd.f32 %v2690, %v2866
  %v2868 = vpop.f32.mrb[0].mxu0
  %2869 = vmatprep.mubr.f32.mxu0 0.0
  %v2870 = vand.u32 %v1639, 4294901760
  %2871 = vmatmul.mubr.f32.gmra.mrb[0].mxu0 %v2870
  %v2872 = vpop.f32.mrb[0].mxu0
  %v2873 = vadd.f32 %v2696, %v2872
  %v2874 = vpop.f32.mrb[0].mxu0
  %2875 = vmatprep.mubr.f32.mxu0 0.0
  %v2876 = vand.u32 %v1640, 4294901760
  %2877 = vmatmul.mubr.f32.gmra.mrb[0].mxu0 %v2876
  %v2878 = vpop.f32.mrb[0].mxu0
  %v2879 = vadd.f32 %v2702, %v2878
  %v2880 = vpop.f32.mrb[0].mxu0
  %2881 = vmatprep.mubr.f32.mxu0 0.0
  %v2882 = vand.u32 %v1641, 4294901760
  %2883 = vmatmul.mubr.f32.gmra.mrb[0].mxu0 %v2882
  %v2884 = vpop.f32.mrb[0].mxu0
  %v2885 = vadd.f32 %v2708, %v2884
  %v2886 = vpop.f32.mrb[0].mxu0
  %2887 = vmatprep.mubr.f32.mxu0 0.0
  %v2888 = vand.u32 %v1642, 4294901760
  %2889 = vmatmul.mubr.f32.gmra.mrb[0].mxu0 %v2888
  %v2890 = vpop.f32.mrb[0].mxu0
  %v2891 = vadd.f32 %v2714, %v2890
  %v2892 = vpop.f32.mrb[0].mxu0
  %2893 = vmatprep.mubr.f32.mxu0 0.0
  %v2894 = vand.u32 %v1643, 4294901760
  %2895 = vmatmul.mubr.f32.gmra.mrb[0].mxu0 %v2894
  %v2896 = vpop.f32.mrb[0].mxu0
  %v2897 = vadd.f32 %v2720, %v2896
  %v2898 = vpop.f32.mrb[0].mxu0
  %2899 = vmatprep.mubr.f32.mxu0 0.0
  %v2900 = vand.u32 %v1644, 4294901760
  %2901 = vmatmul.mubr.f32.gmra.mrb[0].mxu0 %v2900
  %v2902 = vpop.f32.mrb[0].mxu0
  %v2903 = vadd.f32 %v2726, %v2902
  %v2904 = vpop.f32.mrb[0].mxu0
  %2905 = vmatprep.mubr.f32.mxu0 0.0
  %v2906 = vand.u32 %v1645, 4294901760
  %2907 = vmatmul.mubr.f32.gmra.mrb[0].mxu0 %v2906
  %v2908 = vpop.f32.mrb[0].mxu0
  %v2909 = vadd.f32 %v2732, %v2908
  %v2910 = vpop.f32.mrb[0].mxu0
  %2911 = vmatprep.mubr.f32.mxu0 0.0
  %v2912 = vand.u32 %v1646, 4294901760
  %2913 = vmatmul.mubr.f32.gmra.mrb[0].mxu0 %v2912
  %v2914 = vpop.f32.mrb[0].mxu0
  %v2915 = vadd.f32 %v2738, %v2914
  %v2916 = vpop.f32.mrb[0].mxu0
  %2917 = vmatprep.mubr.f32.mxu0 0.0
  %v2918 = vand.u32 %v1647, 4294901760
  %2919 = vmatmul.mubr.f32.gmra.mrb[0].mxu0 %v2918
  %v2920 = vpop.f32.mrb[0].mxu0
  %v2921 = vadd.f32 %v2744, %v2920
  %v2922 = vpop.f32.mrb[0].mxu0
  %2923 = vmatprep.mubr.f32.mxu0 0.0
  %v2924 = vand.u32 %v1648, 4294901760
  %2925 = vmatmul.mubr.f32.gmra.mrb[0].mxu0 %v2924
  %v2926 = vpop.f32.mrb[0].mxu0
  %v2927 = vadd.f32 %v2750, %v2926
  %v2928 = vpop.f32.mrb[0].mxu0
  %2929 = vmatprep.mubr.f32.mxu0 0.0
  %v2930 = vand.u32 %v1649, 4294901760
  %2931 = vmatmul.mubr.f32.gmra.mrb[0].mxu0 %v2930
  %v2932 = vpop.f32.mrb[0].mxu0
  %v2933 = vadd.f32 %v2756, %v2932
  %v2934 = vpop.f32.mrb[0].mxu0
  %2935 = vdwg.mxu0
  %2936 = vst.msk [vmem:[%s5] sm:$0xff] %vm107, %v2843
  %2937 = vst.msk [vmem:[%s5 + $0x8] sm:$0xff] %vm107, %v2849
  %2938 = vst.msk [vmem:[%s5 + $0x10] sm:$0xff] %vm107, %v2855
  %2939 = vst.msk [vmem:[%s5 + $0x18] sm:$0xff] %vm107, %v2861
  %2940 = vst.msk [vmem:[%s5 + $0x20] sm:$0xff] %vm107, %v2867
  %2941 = vst.msk [vmem:[%s5 + $0x28] sm:$0xff] %vm107, %v2873
  %2942 = vst.msk [vmem:[%s5 + $0x30] sm:$0xff] %vm107, %v2879
  %2943 = vst.msk [vmem:[%s5 + $0x38] sm:$0xff] %vm107, %v2885
  %2944 = vst.msk [vmem:[%s5 + $0x40] sm:$0xff] %vm107, %v2891
  %2945 = vst.msk [vmem:[%s5 + $0x48] sm:$0xff] %vm107, %v2897
  %2946 = vst.msk [vmem:[%s5 + $0x50] sm:$0xff] %vm107, %v2903
  %2947 = vst.msk [vmem:[%s5 + $0x58] sm:$0xff] %vm107, %v2909
  %2948 = vst.msk [vmem:[%s5 + $0x60] sm:$0xff] %vm107, %v2915
  %2949 = vst.msk [vmem:[%s5 + $0x68] sm:$0xff] %vm107, %v2921
  %2950 = vst.msk [vmem:[%s5 + $0x70] sm:$0xff] %vm107, %v2927
  %2951 = vst.msk [vmem:[%s5 + $0x78] sm:$0xff] %vm107, %v2933
  // Predicated region
  $region22: #{tpu_custom_call.1} parent=0 // pred_check
    _
  $region23: #{tpu_custom_call.1} parent=0 // pred_check_branch
    %2953 = sbr.rel (0) target = $region25
  $region24: #{tpu_custom_call.1} parent=0 // pred_region
    _
  $region25: #{tpu_custom_call.1} parent=0 // pred_fallthru
    _
  // Predicated region
  $region26: #{tpu_custom_call.1} parent=0 // pred_check
    _
  $region27: #{tpu_custom_call.1} parent=0 // pred_check_branch
    %2955 = sbr.rel (0) target = $region29
  $region28: #{tpu_custom_call.1} parent=0 // pred_region
    _
  $region29: #{tpu_custom_call.1} parent=0 // pred_fallthru
    _

</llo_original>
